<compile_context>
chip_gen: v7x
topology: tpu7x:2x2x1
jax: 0.10.0
libtpu: 0.0.40
codegen_flags: <defaults>
</compile_context>

<pallas_src>
import functools

import jax
import jax.numpy as jnp
from jax import lax
from jax.experimental import pallas as pl
from jax.experimental.pallas import tpu as pltpu

EPS = 1e-5            # nn.LayerNorm default
_NEG_INF = -1e30      # softmax mask value for padded key rows

_BUF1 = {"pipeline_mode": pl.Buffered(1)} if hasattr(pl, "Buffered") else {}


def _const_spec(shape, grid_ndim):
    """BlockSpec for operands whose block index is identical on every grid step
    (weights / biases / LN params): constant index_map + single-buffered."""
    zeros = (0,) * len(shape)
    if grid_ndim == 1:
        imap = lambda i: zeros
    else:
        imap = lambda i, j: zeros
    return pl.BlockSpec(shape, imap, **_BUF1)


def _vmem_budget():
    """Per-kernel VMEM budget, leaving headroom for compiler-internal scratch."""
    try:
        cap = int(pltpu.get_tpu_info().vmem_capacity_bytes)
    except Exception:
        cap = 64 * 1024 * 1024
    return int(min(cap - 12 * 1024 * 1024, 112 * 1024 * 1024))


def _layernorm(x, g, b):
    # PyTorch F.layer_norm: biased variance, eps inside rsqrt; f32 math.
    mu = jnp.mean(x, axis=-1, keepdims=True)
    var = jnp.mean((x - mu) ** 2, axis=-1, keepdims=True)
    return (x - mu) * lax.rsqrt(var + EPS) * g + b


def _row_tile(n, target=512, mult=8):
    """Largest tile <= target that divides n and is a multiple of `mult`."""
    if n <= target:
        return n
    t = target - (target % mult)
    while t >= mult:
        if n % t == 0:
            return t
        t -= mult
    return n


def _round_up(n, m):
    return ((n + m - 1) // m) * m


# ----------------------------- kernels ------------------------------------ #
def embed_kernel(p_ref, w_ref, cls_ref, pos_ref, g_ref, b_ref, o_ref):
    # Patch-embed matmul; row 0 of the patch block is all zeros (CLS slot) and
    # rows >= seq-len are zero padding.
    xe = jnp.dot(p_ref[0], w_ref[...], preferred_element_type=jnp.float32)   # [S_pad, D]
    s_pad, d = xe.shape
    row = lax.broadcasted_iota(jnp.int32, (s_pad, d), 0)
    cls_b = jnp.broadcast_to(cls_ref[...], (s_pad, d))
    x = jnp.where(row == 0, cls_b, xe) + pos_ref[...]
    o_ref[0] = _layernorm(x, g_ref[...], b_ref[...]).astype(o_ref.dtype)


def resblock_kernel(x_ref, ln1g_ref, ln1b_ref, wqkv_ref, bqkv_ref, wo_ref, bo_ref,
                    ln2g_ref, ln2b_ref, wfc_ref, bfc_ref, wproj_ref, bproj_ref,
                    o_ref, k_sc, v_sc, attn_sc, *, n_head, tq, n_qt, kv_len):
    S_pad = x_ref.shape[1]
    D = x_ref.shape[2]
    hd = D // n_head
    scale = 1.0 / (hd ** 0.5)
    f32 = jnp.float32
    bf16 = jnp.bfloat16

    # ---- ln_1 + QKV projection -------------------------------------------- #
    if n_qt == 1:
        # Untiled sequence: one fused [S,D]@[D,3D] matmul (weight pushed once).
        x_t = x_ref[0].astype(f32)                                           # [S_pad, D]
        xn16 = _layernorm(x_t, ln1g_ref[...], ln1b_ref[...]).astype(bf16)
        qkv = jnp.dot(xn16, wqkv_ref[...],
                      preferred_element_type=f32) + bqkv_ref[...]            # [S_pad, 3D]
        q = qkv[:, :D]
        k_sc[...] = qkv[:, D:2 * D].astype(bf16)
        v_sc[...] = qkv[:, 2 * D:].astype(bf16)
    else:
        qi = pl.program_id(1)

        # K/V for the full (padded) sequence: computed once per batch element
        # into VMEM scratch and reused by every query tile.
        @pl.when(qi == 0)
        def _():
            xn_f16 = _layernorm(x_ref[0].astype(f32),
                                ln1g_ref[...], ln1b_ref[...]).astype(bf16)
            k_sc[...] = (jnp.dot(xn_f16, wqkv_ref[:, D:2 * D],
                                 preferred_element_type=f32)
                         + bqkv_ref[:, D:2 * D]).astype(bf16)
            v_sc[...] = (jnp.dot(xn_f16, wqkv_ref[:, 2 * D:],
                                 preferred_element_type=f32)
                         + bqkv_ref[:, 2 * D:]).astype(bf16)

        row0 = pl.multiple_of(qi * tq, tq)
        x_t = x_ref[0, pl.ds(row0, tq), :].astype(f32)                       # [tq, D]
        xn16 = _layernorm(x_t, ln1g_ref[...], ln1b_ref[...]).astype(bf16)
        q = jnp.dot(xn16, wqkv_ref[:, :D],
                    preferred_element_type=f32) + bqkv_ref[:, :D]            # [tq, D]

    # ---- multi-head attention ---------------------------------------------- #
    if kv_len < S_pad:   # padded key rows must not contribute to the softmax
        kmask = lax.broadcasted_iota(jnp.int32, (q.shape[0], S_pad), 1) < kv_len
    else:
        kmask = None

    for h in range(n_head):                      # small static head loop
        sl = slice(h * hd, (h + 1) * hd)
        qh = (q[:, sl] * scale).astype(bf16)
        kh = k_sc[:, sl]                         # bf16 scratch slices
        vh = v_sc[:, sl]
        # scores[i, j] = qh[i, :] . kh[j, :]  -- contract last dims, no transpose.
        s_ = lax.dot_general(qh, kh, (((1,), (1,)), ((), ())),
                             preferred_element_type=f32)                     # [tq, S_pad]
        if kmask is not None:
            s_ = jnp.where(kmask, s_, _NEG_INF)
        s_ = s_ - jnp.max(s_, axis=-1, keepdims=True)
        p = jnp.exp(s_)
        p = p * pl.reciprocal(jnp.sum(p, axis=-1, keepdims=True), approx=True)
        attn_sc[:, sl] = jnp.dot(p.astype(bf16), vh,
                                 preferred_element_type=f32).astype(bf16)

    # Fused output projection: one K=D contraction for all heads.
    attn = jnp.dot(attn_sc[...], wo_ref[...],
                   preferred_element_type=f32) + bo_ref[...]
    x_t = x_t + attn

    # ---- MLP: c_fc -> QuickGELU -> c_proj ----------------------------------- #
    xn2 = _layernorm(x_t, ln2g_ref[...], ln2b_ref[...])
    h1 = jnp.dot(xn2.astype(bf16), wfc_ref[...],
                 preferred_element_type=f32) + bfc_ref[...]
    h1 = h1 * jax.nn.sigmoid(1.702 * h1)                 # QuickGELU (f32)
    h2 = jnp.dot(h1.astype(bf16), wproj_ref[...],
                 preferred_element_type=f32) + bproj_ref[...]
    o_ref[0] = (x_t + h2).astype(o_ref.dtype)


def head_kernel(x_ref, g_ref, b_ref, proj_ref, o_ref):
    # ln_post on the CLS token, then @ proj.
    xn = _layernorm(x_ref[...].astype(jnp.float32), g_ref[...], b_ref[...])
    o_ref[...] = jnp.dot(xn.astype(jnp.bfloat16), proj_ref[...],
                         preferred_element_type=jnp.float32)


# --------------------------- pallas wrappers -------------------------------- #
def embed_ln_pre(patches, w_flat, cls_emb, pos_emb, g, b, *, act_dtype):
    B, S_pad, P_pad = patches.shape
    D = w_flat.shape[1]
    return pl.pallas_call(
        embed_kernel,
        out_shape=jax.ShapeDtypeStruct((B, S_pad, D), act_dtype),
        grid=(B,),
        in_specs=[pl.BlockSpec((1, S_pad, P_pad), lambda bi: (bi, 0, 0)),
                  _const_spec((P_pad, D), 1),
                  _const_spec((1, D), 1),
                  _const_spec((S_pad, D), 1),
                  _const_spec((1, D), 1),
                  _const_spec((1, D), 1)],
        out_specs=pl.BlockSpec((1, S_pad, D), lambda bi: (bi, 0, 0)),
        compiler_params=pltpu.CompilerParams(dimension_semantics=("parallel",)),
    )(patches, w_flat, cls_emb.reshape(1, D), pos_emb,
      g.reshape(1, D), b.reshape(1, D))


def residual_block(x, p, n_head, *, kv_len, seq_tile=256):
    B, S_pad, D = x.shape
    tq = _row_tile(S_pad, seq_tile)
    n_qt = S_pad // tq
    kern = functools.partial(resblock_kernel, n_head=n_head, tq=tq, n_qt=n_qt,
                             kv_len=kv_len)

    cs = lambda shape: _const_spec(shape, 2)
    in_specs = [
        # Full sequence per batch element; index_map ignores the q-tile index,
        # so the block is DMA'd once per batch element (not per q tile).
        pl.BlockSpec((1, S_pad, D), lambda bi, qi: (bi, 0, 0)),
        cs((1, D)), cs((1, D)),
        cs((D, 3 * D)), cs((1, 3 * D)),
        cs((D, D)), cs((1, D)),
        cs((1, D)), cs((1, D)),
        cs((D, 4 * D)), cs((1, 4 * D)),
        cs((4 * D, D)), cs((1, D)),
    ]

    act_bytes = jnp.dtype(x.dtype).itemsize
    flops = int(B * (24 * S_pad * D * D + 4 * S_pad * S_pad * D))
    transcendentals = int(B * (n_head * S_pad * S_pad + 8 * S_pad * D))
    bytes_accessed = int(2 * B * S_pad * D * act_bytes
                         + (12 * D * D) * 2 + (10 * D) * 4)

    extra = {}
    if n_qt == 1:
        # Safe in-place activation update: each grid step reads/writes only its
        # own batch slab and the input block is never re-fetched within a batch.
        extra['input_output_aliases'] = {0: 0}

    return pl.pallas_call(
        kern,
        out_shape=jax.ShapeDtypeStruct((B, S_pad, D), x.dtype),
        grid=(B, n_qt),
        in_specs=in_specs,
        out_specs=pl.BlockSpec((1, tq, D), lambda bi, qi: (bi, qi, 0)),
        scratch_shapes=[pltpu.VMEM((S_pad, D), jnp.bfloat16),   # K (per batch)
                        pltpu.VMEM((S_pad, D), jnp.bfloat16),   # V (per batch)
                        pltpu.VMEM((tq, D), jnp.bfloat16)],     # per-head attn out
        compiler_params=pltpu.CompilerParams(
            dimension_semantics=("parallel", "arbitrary"),
            vmem_limit_bytes=_vmem_budget()),
        cost_estimate=pl.CostEstimate(flops=flops,
                                      transcendentals=transcendentals,
                                      bytes_accessed=bytes_accessed),
        **extra,
    )(x,
      p['ln1_g'], p['ln1_b'],
      p['wqkv'], p['bqkv'],
      p['wo'], p['bo'],
      p['ln2_g'], p['ln2_b'],
      p['wfc'], p['bfc'],
      p['wproj'], p['bproj'])


def vit_head(cls_tok, g, b, proj):
    B, D = cls_tok.shape
    O = proj.shape[1]
    tb = _row_tile(B, 512)
    return pl.pallas_call(
        head_kernel,
        out_shape=jax.ShapeDtypeStruct((B, O), jnp.float32),
        grid=(B // tb,),
        in_specs=[pl.BlockSpec((tb, D), lambda i: (i, 0)),
                  _const_spec((1, D), 1),
                  _const_spec((1, D), 1),
                  _const_spec((D, O), 1)],
        out_specs=pl.BlockSpec((tb, O), lambda i: (i, 0)),
        compiler_params=pltpu.CompilerParams(dimension_semantics=("parallel",)),
    )(cls_tok, g.reshape(1, D), b.reshape(1, D), proj)


# ----------------------------- full forward --------------------------------- #
def vision_transformer_forward(x, params, *, patch_size, n_head, seq_tile=256,
                               act_dtype=jnp.bfloat16):
    B, C, H, W = x.shape
    p = patch_size
    Hp, Wp = H // p, W // p
    N = Hp * Wp
    S = N + 1                                  # CLS + patches (true kv length)
    P = C * p * p
    P_pad = params['conv_w_flat'].shape[0]     # contraction dim padded to 128
    S_pad = params['pos_emb'].shape[0]         # sequence padded to multiple of 8

    # conv1 as patch extraction (glue).  Row 0 is left zero for the CLS slot,
    # rows padded to S_pad (masked inside attention), K padded with zeros.
    patches = (x.reshape(B, C, Hp, p, Wp, p)
                .transpose(0, 2, 4, 1, 3, 5)
                .reshape(B, N, P))
    patches = jnp.pad(patches,
                      ((0, 0), (1, S_pad - S), (0, P_pad - P))).astype(jnp.bfloat16)

    # fused: patch-embed matmul + CLS insert + positional add + ln_pre -> bf16
    xseq = embed_ln_pre(patches, params['conv_w_flat'], params['class_emb'],
                        params['pos_emb'], params['ln_pre_g'], params['ln_pre_b'],
                        act_dtype=act_dtype)

    for blk in params['blocks']:
        xseq = residual_block(xseq, blk, n_head, kv_len=S, seq_tile=seq_tile)

    # ln_post(x[:, 0, :]) @ proj
    cls_tok = xseq[:, 0, :]
    return vit_head(cls_tok, params['ln_post_g'], params['ln_post_b'], params['proj'])


# ----------------------------- parameters ----------------------------------- #
def init_params(key, *, input_resolution, patch_size, width, layers, heads, output_dim):
    del heads  # not needed for parameter shapes
    n_patches = (input_resolution // patch_size) ** 2
    S = n_patches + 1
    S_pad = _round_up(S, 8)
    P = 3 * patch_size * patch_size
    P_pad = _round_up(P, 128)
    scale = width ** (-0.5)
    bf16 = jnp.bfloat16
    f32 = jnp.float32

    key_box = [key]

    def nxt():
        key_box[0], k = jax.random.split(key_box[0])
        return k

    def nrm(shape, s=0.02):
        return (s * jax.random.normal(nxt(), shape)).astype(f32)

    # Conv2d(3, width, k=patch, stride=patch, bias=False) -> flattened, K-padded
    conv_w = nrm((width, 3, patch_size, patch_size))
    conv_w_flat = jnp.pad(conv_w.reshape(width, P).T,
                          ((0, P_pad - P), (0, 0))).astype(bf16)          # [P_pad, width]

    pos = nrm((S, width), scale)
    pos_emb = jnp.pad(pos, ((0, S_pad - S), (0, 0)))                      # padded rows = 0

    params = dict(
        conv_w_flat=conv_w_flat,
        class_emb=nrm((width,), scale),
        pos_emb=pos_emb,                                                  # [S_pad, width] f32
        ln_pre_g=jnp.ones((width,), f32),
        ln_pre_b=nrm((width,)),
        ln_post_g=jnp.ones((width,), f32),
        ln_post_b=nrm((width,)),
        proj=nrm((width, output_dim), scale).astype(bf16),
        blocks=[],
    )
    for _ in range(layers):
        blk = dict(
            ln1_g=jnp.ones((1, width), f32),
            ln1_b=nrm((1, width)),
            wqkv=nrm((width, 3 * width)).astype(bf16),   # x @ Wqkv, columns = [Q|K|V]
            bqkv=nrm((1, 3 * width)),
            wo=nrm((width, width)).astype(bf16),
            bo=nrm((1, width)),
            ln2_g=jnp.ones((1, width), f32),
            ln2_b=nrm((1, width)),
            wfc=nrm((width, 4 * width)).astype(bf16),
            bfc=nrm((1, 4 * width)),
            wproj=nrm((4 * width, width)).astype(bf16),
            bproj=nrm((1, width)),
        )
        params['blocks'].append(blk)
    return params


# ----------------------------- pure-JAX reference ---------------------------- #
def vit_reference(x, params, *, patch_size, n_head):
    """f32 reference mirroring the PyTorch module (for validation only)."""
    f32 = jnp.float32
    B, C, H, W = x.shape
    p = patch_size
    Hp, Wp = H // p, W // p
    N = Hp * Wp
    P = C * p * p
    w = params['conv_w_flat'].astype(f32)[:P]
    D = w.shape[1]
    S = N + 1
    hd = D // n_head

    patches = (x.reshape(B, C, Hp, p, Wp, p)
                .transpose(0, 2, 4, 1, 3, 5)
                .reshape(B, N, P))
    xe = patches @ w
    cls = jnp.broadcast_to(params['class_emb'].astype(f32).reshape(1, 1, D), (B, 1, D))
    xs = jnp.concatenate([cls, xe], axis=1) + params['pos_emb'].astype(f32)[:S][None]
    xs = _layernorm(xs, params['ln_pre_g'], params['ln_pre_b'])

    for blk in params['blocks']:
        xn = _layernorm(xs, blk['ln1_g'].reshape(-1), blk['ln1_b'].reshape(-1))
        qkv = xn @ blk['wqkv'].astype(f32) + blk['bqkv'].reshape(-1)
        q, k, v = qkv[..., :D], qkv[..., D:2 * D], qkv[..., 2 * D:]
        q = q.reshape(B, S, n_head, hd).transpose(0, 2, 1, 3)
        k = k.reshape(B, S, n_head, hd).transpose(0, 2, 1, 3)
        v = v.reshape(B, S, n_head, hd).transpose(0, 2, 1, 3)
        s = jnp.einsum('bhqd,bhkd->bhqk', q, k) / (hd ** 0.5)
        a = jax.nn.softmax(s, axis=-1)
        o = jnp.einsum('bhqk,bhkd->bhqd', a, v).transpose(0, 2, 1, 3).reshape(B, S, D)
        xs = xs + o @ blk['wo'].astype(f32) + blk['bo'].reshape(-1)
        xn2 = _layernorm(xs, blk['ln2_g'].reshape(-1), blk['ln2_b'].reshape(-1))
        h1 = xn2 @ blk['wfc'].astype(f32) + blk['bfc'].reshape(-1)
        h1 = h1 * jax.nn.sigmoid(1.702 * h1)
        xs = xs + h1 @ blk['wproj'].astype(f32) + blk['bproj'].reshape(-1)

    cls_tok = _layernorm(xs[:, 0, :], params['ln_post_g'], params['ln_post_b'])
    return cls_tok @ params['proj'].astype(f32)


# --------------------------------- main -------------------------------------- #
if __name__ == "__main__":
    def run_case(name, *, B, input_resolution, patch_size, width, layers, heads,
                 output_dim, seq_tile):
        key = jax.random.PRNGKey(0)
        kx, kp = jax.random.split(key)
        x = jax.random.normal(kx, (B, 3, input_resolution, input_resolution),
                              dtype=jnp.float32)
        params = init_params(kp, input_resolution=input_resolution,
                             patch_size=patch_size, width=width, layers=layers,
                             heads=heads, output_dim=output_dim)
        fwd = jax.jit(functools.partial(vision_transformer_forward,
                                        patch_size=patch_size, n_head=heads,
                                        seq_tile=seq_tile))
        out = jax.block_until_ready(fwd(x, params))
        assert out.shape == (B, output_dim) and out.dtype == jnp.float32
        ref = vit_reference(x, params, patch_size=patch_size, n_head=heads)
        err = float(jnp.max(jnp.abs(out - ref)))
        assert err < 0.15, f"{name}: max|diff| = {err}"

    # Case 1: untiled-sequence path (n_qt == 1), batch-parallel grid.
    run_case("base", B=2, input_resolution=16, patch_size=8, width=32, layers=2,
             heads=4, output_dim=16, seq_tile=256)
    # Case 2: query-tiled path (K/V VMEM-scratch reuse + padded-key masking).
    run_case("tiled", B=1, input_resolution=32, patch_size=8, width=32, layers=2,
             heads=4, output_dim=16, seq_tile=8)

    print("KERNEL_OK")
</pallas_src>

<mosaic_0001>
module attributes {stable_mosaic.version = 11 : i64} {
  func.func @embed_kernel(%arg0: i32, %arg1: memref<1x8x256xbf16, #tpu.memory_space<vmem>>, %arg2: memref<256x32xbf16, #tpu.memory_space<vmem>>, %arg3: memref<1x32xf32, #tpu.memory_space<vmem>>, %arg4: memref<8x32xf32, #tpu.memory_space<vmem>>, %arg5: memref<1x32xf32, #tpu.memory_space<vmem>>, %arg6: memref<1x32xf32, #tpu.memory_space<vmem>>, %arg7: memref<1x8x32xbf16, #tpu.memory_space<vmem>>) attributes {dimension_semantics = [#tpu.dimension_semantics<parallel>], iteration_bounds = array<i64: 2>, scalar_prefetch = 0 : i64, scratch_operands = 0 : i64, tpu.core_type = #tpu.core_type<tc>, window_params = [{transform_indices = @transform_0, window_bounds = array<i64: 1, 8, 256>}, {pipeline_mode = #tpu.pipeline_mode<synchronous>, transform_indices = @transform_1, window_bounds = array<i64: 256, 32>}, {pipeline_mode = #tpu.pipeline_mode<synchronous>, transform_indices = @transform_2, window_bounds = array<i64: 1, 32>}, {pipeline_mode = #tpu.pipeline_mode<synchronous>, transform_indices = @transform_3, window_bounds = array<i64: 8, 32>}, {pipeline_mode = #tpu.pipeline_mode<synchronous>, transform_indices = @transform_4, window_bounds = array<i64: 1, 32>}, {pipeline_mode = #tpu.pipeline_mode<synchronous>, transform_indices = @transform_5, window_bounds = array<i64: 1, 32>}, {transform_indices = @transform_6, window_bounds = array<i64: 1, 8, 32>}]} {
    %c0 = arith.constant 0 : index
    %c0_0 = arith.constant 0 : index
    %c0_1 = arith.constant 0 : index
    %0 = vector.load %arg1[%c0, %c0_0, %c0_1] : memref<1x8x256xbf16, #tpu.memory_space<vmem>>, vector<1x8x256xbf16>
    %1 = vector.shape_cast %0 : vector<1x8x256xbf16> to vector<8x256xbf16>
    %c0_2 = arith.constant 0 : index
    %c0_3 = arith.constant 0 : index
    %2 = vector.load %arg2[%c0_2, %c0_3] : memref<256x32xbf16, #tpu.memory_space<vmem>>, vector<256x32xbf16>
    %cst = arith.constant dense<0.000000e+00> : vector<8x32xf32>
    %3 = tpu.matmul %1, %2, %cst {dimension_numbers = #tpu.dot_dimension_numbers<[1], [0], [0], [1], [0, 0, 1, 1], [], []>} : vector<8x256xbf16>, vector<256x32xbf16>, vector<8x32xf32> -> vector<8x32xf32>
    %4 = tpu.iota {dimensions = array<i32: 0>} : vector<8x32xi32>
    %c0_4 = arith.constant 0 : index
    %c0_5 = arith.constant 0 : index
    %5 = vector.load %arg3[%c0_4, %c0_5] : memref<1x32xf32, #tpu.memory_space<vmem>>, vector<1x32xf32>
    %6 = vector.shape_cast %5 : vector<1x32xf32> to vector<1x32xf32>
    %7 = vector.broadcast %6 : vector<1x32xf32> to vector<8x32xf32>
    %c0_i32 = arith.constant 0 : i32
    %8 = vector.broadcast %c0_i32 : i32 to vector<8x32xi32>
    %9 = arith.cmpi eq, %4, %8 : vector<8x32xi32>
    %10 = arith.select %9, %7, %3 : vector<8x32xi1>, vector<8x32xf32>
    %c0_6 = arith.constant 0 : index
    %c0_7 = arith.constant 0 : index
    %11 = vector.load %arg4[%c0_6, %c0_7] : memref<8x32xf32, #tpu.memory_space<vmem>>, vector<8x32xf32>
    %12 = arith.addf %10, %11 : vector<8x32xf32>
    %c0_8 = arith.constant 0 : index
    %c0_9 = arith.constant 0 : index
    %13 = vector.load %arg5[%c0_8, %c0_9] : memref<1x32xf32, #tpu.memory_space<vmem>>, vector<1x32xf32>
    %c0_10 = arith.constant 0 : index
    %c0_11 = arith.constant 0 : index
    %14 = vector.load %arg6[%c0_10, %c0_11] : memref<1x32xf32, #tpu.memory_space<vmem>>, vector<1x32xf32>
    %cst_12 = arith.constant dense<0.000000e+00> : vector<8xf32>
    %15 = vector.multi_reduction <add>, %12, %cst_12 [1] : vector<8x32xf32> to vector<8xf32>
    %16 = vector.shape_cast %15 : vector<8xf32> to vector<8x1xf32>
    %cst_13 = arith.constant 3.200000e+01 : f32
    %17 = vector.broadcast %cst_13 : f32 to vector<8x1xf32>
    %18 = arith.divf %16, %17 : vector<8x1xf32>
    %19 = vector.broadcast %18 : vector<8x1xf32> to vector<8x32xf32>
    %20 = arith.subf %12, %19 : vector<8x32xf32>
    %21 = arith.mulf %20, %20 : vector<8x32xf32>
    %cst_14 = arith.constant dense<0.000000e+00> : vector<8xf32>
    %22 = vector.multi_reduction <add>, %21, %cst_14 [1] : vector<8x32xf32> to vector<8xf32>
    %23 = vector.shape_cast %22 : vector<8xf32> to vector<8x1xf32>
    %cst_15 = arith.constant 3.200000e+01 : f32
    %24 = vector.broadcast %cst_15 : f32 to vector<8x1xf32>
    %25 = arith.divf %23, %24 : vector<8x1xf32>
    %26 = vector.broadcast %18 : vector<8x1xf32> to vector<8x32xf32>
    %27 = arith.subf %12, %26 : vector<8x32xf32>
    %cst_16 = arith.constant 9.99999974E-6 : f32
    %28 = vector.broadcast %cst_16 : f32 to vector<8x1xf32>
    %29 = arith.addf %25, %28 : vector<8x1xf32>
    %30 = math.rsqrt %29 : vector<8x1xf32>
    %31 = vector.broadcast %30 : vector<8x1xf32> to vector<8x32xf32>
    %32 = arith.mulf %27, %31 : vector<8x32xf32>
    %33 = vector.broadcast %13 : vector<1x32xf32> to vector<8x32xf32>
    %34 = arith.mulf %32, %33 : vector<8x32xf32>
    %35 = vector.broadcast %14 : vector<1x32xf32> to vector<8x32xf32>
    %36 = arith.addf %34, %35 : vector<8x32xf32>
    %37 = arith.truncf %36 : vector<8x32xf32> to vector<8x32xbf16>
    %c0_17 = arith.constant 0 : index
    %c0_18 = arith.constant 0 : index
    %c0_19 = arith.constant 0 : index
    %38 = vector.load %arg7[%c0_17, %c0_18, %c0_19] : memref<1x8x32xbf16, #tpu.memory_space<vmem>>, vector<1x8x32xbf16>
    %39 = vector.shape_cast %38 : vector<1x8x32xbf16> to vector<8x32xbf16>
    %40 = vector.shape_cast %37 : vector<8x32xbf16> to vector<1x8x32xbf16>
    tpu.vector_store %arg7[%c0_17, %c0_18, %c0_19], %40 {strides = array<i32>} : memref<1x8x32xbf16, #tpu.memory_space<vmem>>, vector<1x8x32xbf16>,
    return
  }
  func.func @transform_0(%arg0: i32) -> (i32, i32, i32) {
    %c0_i32 = arith.constant 0 : i32
    %c0_i32_0 = arith.constant 0 : i32
    %c0_i32_1 = arith.constant 0 : i32
    return %arg0, %c0_i32, %c0_i32_0 : i32, i32, i32
  }
  func.func @transform_1(%arg0: i32) -> (i32, i32) {
    %c0_i32 = arith.constant 0 : i32
    %c0_i32_0 = arith.constant 0 : i32
    %c0_i32_1 = arith.constant 0 : i32
    return %c0_i32, %c0_i32_0 : i32, i32
  }
  func.func @transform_2(%arg0: i32) -> (i32, i32) {
    %c0_i32 = arith.constant 0 : i32
    %c0_i32_0 = arith.constant 0 : i32
    %c0_i32_1 = arith.constant 0 : i32
    return %c0_i32, %c0_i32_0 : i32, i32
  }
  func.func @transform_3(%arg0: i32) -> (i32, i32) {
    %c0_i32 = arith.constant 0 : i32
    %c0_i32_0 = arith.constant 0 : i32
    %c0_i32_1 = arith.constant 0 : i32
    return %c0_i32, %c0_i32_0 : i32, i32
  }
  func.func @transform_4(%arg0: i32) -> (i32, i32) {
    %c0_i32 = arith.constant 0 : i32
    %c0_i32_0 = arith.constant 0 : i32
    %c0_i32_1 = arith.constant 0 : i32
    return %c0_i32, %c0_i32_0 : i32, i32
  }
  func.func @transform_5(%arg0: i32) -> (i32, i32) {
    %c0_i32 = arith.constant 0 : i32
    %c0_i32_0 = arith.constant 0 : i32
    %c0_i32_1 = arith.constant 0 : i32
    return %c0_i32, %c0_i32_0 : i32, i32
  }
  func.func @transform_6(%arg0: i32) -> (i32, i32, i32) {
    %c0_i32 = arith.constant 0 : i32
    %c0_i32_0 = arith.constant 0 : i32
    %c0_i32_1 = arith.constant 0 : i32
    return %arg0, %c0_i32, %c0_i32_0 : i32, i32, i32
  }
}

module attributes {stable_mosaic.version = 11 : i64} {
  func.func @head_kernel(%arg0: i32, %arg1: memref<2x32xbf16, #tpu.memory_space<vmem>>, %arg2: memref<1x32xf32, #tpu.memory_space<vmem>>, %arg3: memref<1x32xf32, #tpu.memory_space<vmem>>, %arg4: memref<32x16xbf16, #tpu.memory_space<vmem>>, %arg5: memref<2x16xf32, #tpu.memory_space<vmem>>) attributes {dimension_semantics = [#tpu.dimension_semantics<parallel>], iteration_bounds = array<i64: 1>, scalar_prefetch = 0 : i64, scratch_operands = 0 : i64, tpu.core_type = #tpu.core_type<tc>, window_params = [{transform_indices = @transform_0, window_bounds = array<i64: 2, 32>}, {pipeline_mode = #tpu.pipeline_mode<synchronous>, transform_indices = @transform_1, window_bounds = array<i64: 1, 32>}, {pipeline_mode = #tpu.pipeline_mode<synchronous>, transform_indices = @transform_2, window_bounds = array<i64: 1, 32>}, {pipeline_mode = #tpu.pipeline_mode<synchronous>, transform_indices = @transform_3, window_bounds = array<i64: 32, 16>}, {transform_indices = @transform_4, window_bounds = array<i64: 2, 16>}]} {
    %c0 = arith.constant 0 : index
    %c0_0 = arith.constant 0 : index
    %0 = vector.load %arg1[%c0, %c0_0] : memref<2x32xbf16, #tpu.memory_space<vmem>>, vector<2x32xbf16>
    %1 = arith.extf %0 : vector<2x32xbf16> to vector<2x32xf32>
    %c0_1 = arith.constant 0 : index
    %c0_2 = arith.constant 0 : index
    %2 = vector.load %arg2[%c0_1, %c0_2] : memref<1x32xf32, #tpu.memory_space<vmem>>, vector<1x32xf32>
    %c0_3 = arith.constant 0 : index
    %c0_4 = arith.constant 0 : index
    %3 = vector.load %arg3[%c0_3, %c0_4] : memref<1x32xf32, #tpu.memory_space<vmem>>, vector<1x32xf32>
    %cst = arith.constant dense<0.000000e+00> : vector<2xf32>
    %4 = vector.multi_reduction <add>, %1, %cst [1] : vector<2x32xf32> to vector<2xf32>
    %5 = vector.shape_cast %4 : vector<2xf32> to vector<2x1xf32>
    %cst_5 = arith.constant 3.200000e+01 : f32
    %6 = vector.broadcast %cst_5 : f32 to vector<2x1xf32>
    %7 = arith.divf %5, %6 : vector<2x1xf32>
    %8 = vector.broadcast %7 : vector<2x1xf32> to vector<2x32xf32>
    %9 = arith.subf %1, %8 : vector<2x32xf32>
    %10 = arith.mulf %9, %9 : vector<2x32xf32>
    %cst_6 = arith.constant dense<0.000000e+00> : vector<2xf32>
    %11 = vector.multi_reduction <add>, %10, %cst_6 [1] : vector<2x32xf32> to vector<2xf32>
    %12 = vector.shape_cast %11 : vector<2xf32> to vector<2x1xf32>
    %cst_7 = arith.constant 3.200000e+01 : f32
    %13 = vector.broadcast %cst_7 : f32 to vector<2x1xf32>
    %14 = arith.divf %12, %13 : vector<2x1xf32>
    %15 = vector.broadcast %7 : vector<2x1xf32> to vector<2x32xf32>
    %16 = arith.subf %1, %15 : vector<2x32xf32>
    %cst_8 = arith.constant 9.99999974E-6 : f32
    %17 = vector.broadcast %cst_8 : f32 to vector<2x1xf32>
    %18 = arith.addf %14, %17 : vector<2x1xf32>
    %19 = math.rsqrt %18 : vector<2x1xf32>
    %20 = vector.broadcast %19 : vector<2x1xf32> to vector<2x32xf32>
    %21 = arith.mulf %16, %20 : vector<2x32xf32>
    %22 = vector.broadcast %2 : vector<1x32xf32> to vector<2x32xf32>
    %23 = arith.mulf %21, %22 : vector<2x32xf32>
    %24 = vector.broadcast %3 : vector<1x32xf32> to vector<2x32xf32>
    %25 = arith.addf %23, %24 : vector<2x32xf32>
    %26 = arith.truncf %25 : vector<2x32xf32> to vector<2x32xbf16>
    %c0_9 = arith.constant 0 : index
    %c0_10 = arith.constant 0 : index
    %27 = vector.load %arg4[%c0_9, %c0_10] : memref<32x16xbf16, #tpu.memory_space<vmem>>, vector<32x16xbf16>
    %cst_11 = arith.constant dense<0.000000e+00> : vector<2x16xf32>
    %28 = tpu.matmul %26, %27, %cst_11 {dimension_numbers = #tpu.dot_dimension_numbers<[1], [0], [0], [1], [0, 0, 1, 1], [], []>} : vector<2x32xbf16>, vector<32x16xbf16>, vector<2x16xf32> -> vector<2x16xf32>
    %c0_12 = arith.constant 0 : index
    %c0_13 = arith.constant 0 : index
    %29 = vector.load %arg5[%c0_12, %c0_13] : memref<2x16xf32, #tpu.memory_space<vmem>>, vector<2x16xf32>
    tpu.vector_store %arg5[%c0_12, %c0_13], %28 {strides = array<i32>} : memref<2x16xf32, #tpu.memory_space<vmem>>, vector<2x16xf32>,
    return
  }
  func.func @transform_0(%arg0: i32) -> (i32, i32) {
    %c0_i32 = arith.constant 0 : i32
    %c0_i32_0 = arith.constant 0 : i32
    return %arg0, %c0_i32 : i32, i32
  }
  func.func @transform_1(%arg0: i32) -> (i32, i32) {
    %c0_i32 = arith.constant 0 : i32
    %c0_i32_0 = arith.constant 0 : i32
    %c0_i32_1 = arith.constant 0 : i32
    return %c0_i32, %c0_i32_0 : i32, i32
  }
  func.func @transform_2(%arg0: i32) -> (i32, i32) {
    %c0_i32 = arith.constant 0 : i32
    %c0_i32_0 = arith.constant 0 : i32
    %c0_i32_1 = arith.constant 0 : i32
    return %c0_i32, %c0_i32_0 : i32, i32
  }
  func.func @transform_3(%arg0: i32) -> (i32, i32) {
    %c0_i32 = arith.constant 0 : i32
    %c0_i32_0 = arith.constant 0 : i32
    %c0_i32_1 = arith.constant 0 : i32
    return %c0_i32, %c0_i32_0 : i32, i32
  }
  func.func @transform_4(%arg0: i32) -> (i32, i32) {
    %c0_i32 = arith.constant 0 : i32
    %c0_i32_0 = arith.constant 0 : i32
    return %arg0, %c0_i32 : i32, i32
  }
}

module attributes {stable_mosaic.version = 11 : i64} {
  func.func @resblock_kernel(%arg0: i32, %arg1: i32, %arg2: memref<1x8x32xbf16, #tpu.memory_space<vmem>>, %arg3: memref<1x32xf32, #tpu.memory_space<vmem>>, %arg4: memref<1x32xf32, #tpu.memory_space<vmem>>, %arg5: memref<32x96xbf16, #tpu.memory_space<vmem>>, %arg6: memref<1x96xf32, #tpu.memory_space<vmem>>, %arg7: memref<32x32xbf16, #tpu.memory_space<vmem>>, %arg8: memref<1x32xf32, #tpu.memory_space<vmem>>, %arg9: memref<1x32xf32, #tpu.memory_space<vmem>>, %arg10: memref<1x32xf32, #tpu.memory_space<vmem>>, %arg11: memref<32x128xbf16, #tpu.memory_space<vmem>>, %arg12: memref<1x128xf32, #tpu.memory_space<vmem>>, %arg13: memref<128x32xbf16, #tpu.memory_space<vmem>>, %arg14: memref<1x32xf32, #tpu.memory_space<vmem>>, %arg15: memref<1x8x32xbf16, #tpu.memory_space<vmem>>, %arg16: memref<8x32xbf16, #tpu.memory_space<vmem>>, %arg17: memref<8x32xbf16, #tpu.memory_space<vmem>>, %arg18: memref<8x32xbf16, #tpu.memory_space<vmem>>) attributes {dimension_semantics = [#tpu.dimension_semantics<parallel>, #tpu.dimension_semantics<arbitrary>], iteration_bounds = array<i64: 2, 1>, scalar_prefetch = 0 : i64, scratch_operands = 3 : i64, tpu.core_type = #tpu.core_type<tc>, window_params = [{transform_indices = @transform_0, window_bounds = array<i64: 1, 8, 32>}, {pipeline_mode = #tpu.pipeline_mode<synchronous>, transform_indices = @transform_1, window_bounds = array<i64: 1, 32>}, {pipeline_mode = #tpu.pipeline_mode<synchronous>, transform_indices = @transform_2, window_bounds = array<i64: 1, 32>}, {pipeline_mode = #tpu.pipeline_mode<synchronous>, transform_indices = @transform_3, window_bounds = array<i64: 32, 96>}, {pipeline_mode = #tpu.pipeline_mode<synchronous>, transform_indices = @transform_4, window_bounds = array<i64: 1, 96>}, {pipeline_mode = #tpu.pipeline_mode<synchronous>, transform_indices = @transform_5, window_bounds = array<i64: 32, 32>}, {pipeline_mode = #tpu.pipeline_mode<synchronous>, transform_indices = @transform_6, window_bounds = array<i64: 1, 32>}, {pipeline_mode = #tpu.pipeline_mode<synchronous>, transform_indices = @transform_7, window_bounds = array<i64: 1, 32>}, {pipeline_mode = #tpu.pipeline_mode<synchronous>, transform_indices = @transform_8, window_bounds = array<i64: 1, 32>}, {pipeline_mode = #tpu.pipeline_mode<synchronous>, transform_indices = @transform_9, window_bounds = array<i64: 32, 128>}, {pipeline_mode = #tpu.pipeline_mode<synchronous>, transform_indices = @transform_10, window_bounds = array<i64: 1, 128>}, {pipeline_mode = #tpu.pipeline_mode<synchronous>, transform_indices = @transform_11, window_bounds = array<i64: 128, 32>}, {pipeline_mode = #tpu.pipeline_mode<synchronous>, transform_indices = @transform_12, window_bounds = array<i64: 1, 32>}, {transform_indices = @transform_13, window_bounds = array<i64: 1, 8, 32>}]} {
    %c0 = arith.constant 0 : index
    %c0_0 = arith.constant 0 : index
    %c0_1 = arith.constant 0 : index
    %0 = vector.load %arg2[%c0, %c0_0, %c0_1] : memref<1x8x32xbf16, #tpu.memory_space<vmem>>, vector<1x8x32xbf16>
    %1 = vector.shape_cast %0 : vector<1x8x32xbf16> to vector<8x32xbf16>
    %2 = arith.extf %1 : vector<8x32xbf16> to vector<8x32xf32>
    %c0_2 = arith.constant 0 : index
    %c0_3 = arith.constant 0 : index
    %3 = vector.load %arg3[%c0_2, %c0_3] : memref<1x32xf32, #tpu.memory_space<vmem>>, vector<1x32xf32>
    %c0_4 = arith.constant 0 : index
    %c0_5 = arith.constant 0 : index
    %4 = vector.load %arg4[%c0_4, %c0_5] : memref<1x32xf32, #tpu.memory_space<vmem>>, vector<1x32xf32>
    %cst = arith.constant dense<0.000000e+00> : vector<8xf32>
    %5 = vector.multi_reduction <add>, %2, %cst [1] : vector<8x32xf32> to vector<8xf32>
    %6 = vector.shape_cast %5 : vector<8xf32> to vector<8x1xf32>
    %cst_6 = arith.constant 3.200000e+01 : f32
    %7 = vector.broadcast %cst_6 : f32 to vector<8x1xf32>
    %8 = arith.divf %6, %7 : vector<8x1xf32>
    %9 = vector.broadcast %8 : vector<8x1xf32> to vector<8x32xf32>
    %10 = arith.subf %2, %9 : vector<8x32xf32>
    %11 = arith.mulf %10, %10 : vector<8x32xf32>
    %cst_7 = arith.constant dense<0.000000e+00> : vector<8xf32>
    %12 = vector.multi_reduction <add>, %11, %cst_7 [1] : vector<8x32xf32> to vector<8xf32>
    %13 = vector.shape_cast %12 : vector<8xf32> to vector<8x1xf32>
    %cst_8 = arith.constant 3.200000e+01 : f32
    %14 = vector.broadcast %cst_8 : f32 to vector<8x1xf32>
    %15 = arith.divf %13, %14 : vector<8x1xf32>
    %16 = vector.broadcast %8 : vector<8x1xf32> to vector<8x32xf32>
    %17 = arith.subf %2, %16 : vector<8x32xf32>
    %cst_9 = arith.constant 9.99999974E-6 : f32
    %18 = vector.broadcast %cst_9 : f32 to vector<8x1xf32>
    %19 = arith.addf %15, %18 : vector<8x1xf32>
    %20 = math.rsqrt %19 : vector<8x1xf32>
    %21 = vector.broadcast %20 : vector<8x1xf32> to vector<8x32xf32>
    %22 = arith.mulf %17, %21 : vector<8x32xf32>
    %23 = vector.broadcast %3 : vector<1x32xf32> to vector<8x32xf32>
    %24 = arith.mulf %22, %23 : vector<8x32xf32>
    %25 = vector.broadcast %4 : vector<1x32xf32> to vector<8x32xf32>
    %26 = arith.addf %24, %25 : vector<8x32xf32>
    %27 = arith.truncf %26 : vector<8x32xf32> to vector<8x32xbf16>
    %c0_10 = arith.constant 0 : index
    %c0_11 = arith.constant 0 : index
    %28 = vector.load %arg5[%c0_10, %c0_11] : memref<32x96xbf16, #tpu.memory_space<vmem>>, vector<32x96xbf16>
    %cst_12 = arith.constant dense<0.000000e+00> : vector<8x96xf32>
    %29 = tpu.matmul %27, %28, %cst_12 {dimension_numbers = #tpu.dot_dimension_numbers<[1], [0], [0], [1], [0, 0, 1, 1], [], []>} : vector<8x32xbf16>, vector<32x96xbf16>, vector<8x96xf32> -> vector<8x96xf32>
    %c0_13 = arith.constant 0 : index
    %c0_14 = arith.constant 0 : index
    %30 = vector.load %arg6[%c0_13, %c0_14] : memref<1x96xf32, #tpu.memory_space<vmem>>, vector<1x96xf32>
    %31 = vector.broadcast %30 : vector<1x96xf32> to vector<8x96xf32>
    %32 = arith.addf %29, %31 : vector<8x96xf32>
    %33 = vector.extract_strided_slice %32 {offsets = [0, 0], sizes = [8, 32], strides = [1, 1]} : vector<8x96xf32> to vector<8x32xf32>
    %34 = vector.extract_strided_slice %32 {offsets = [0, 32], sizes = [8, 32], strides = [1, 1]} : vector<8x96xf32> to vector<8x32xf32>
    %35 = arith.truncf %34 : vector<8x32xf32> to vector<8x32xbf16>
    %c0_15 = arith.constant 0 : index
    %c0_16 = arith.constant 0 : index
    %36 = vector.load %arg16[%c0_15, %c0_16] : memref<8x32xbf16, #tpu.memory_space<vmem>>, vector<8x32xbf16>
    tpu.vector_store %arg16[%c0_15, %c0_16], %35 {strides = array<i32>} : memref<8x32xbf16, #tpu.memory_space<vmem>>, vector<8x32xbf16>,
    %37 = vector.extract_strided_slice %32 {offsets = [0, 64], sizes = [8, 32], strides = [1, 1]} : vector<8x96xf32> to vector<8x32xf32>
    %38 = arith.truncf %37 : vector<8x32xf32> to vector<8x32xbf16>
    %c0_17 = arith.constant 0 : index
    %c0_18 = arith.constant 0 : index
    %39 = vector.load %arg17[%c0_17, %c0_18] : memref<8x32xbf16, #tpu.memory_space<vmem>>, vector<8x32xbf16>
    tpu.vector_store %arg17[%c0_17, %c0_18], %38 {strides = array<i32>} : memref<8x32xbf16, #tpu.memory_space<vmem>>, vector<8x32xbf16>,
    %40 = tpu.iota {dimensions = array<i32: 1>} : vector<8x8xi32>
    %c5_i32 = arith.constant 5 : i32
    %41 = vector.broadcast %c5_i32 : i32 to vector<8x8xi32>
    %42 = arith.cmpi slt, %40, %41 : vector<8x8xi32>
    %43 = vector.extract_strided_slice %33 {offsets = [0, 0], sizes = [8, 8], strides = [1, 1]} : vector<8x32xf32> to vector<8x8xf32>
    %cst_19 = arith.constant 0.353553385 : f32
    %44 = vector.broadcast %cst_19 : f32 to vector<8x8xf32>
    %45 = arith.mulf %43, %44 : vector<8x8xf32>
    %46 = arith.truncf %45 : vector<8x8xf32> to vector<8x8xbf16>
    %c0_20 = arith.constant 0 : index
    %c0_21 = arith.constant 0 : index
    %47 = vector.load %arg16[%c0_20, %c0_21] : memref<8x32xbf16, #tpu.memory_space<vmem>>, vector<8x8xbf16>
    %c0_22 = arith.constant 0 : index
    %c0_23 = arith.constant 0 : index
    %48 = vector.load %arg17[%c0_22, %c0_23] : memref<8x32xbf16, #tpu.memory_space<vmem>>, vector<8x8xbf16>
    %cst_24 = arith.constant dense<0.000000e+00> : vector<8x8xf32>
    %49 = tpu.matmul %46, %47, %cst_24 {dimension_numbers = #tpu.dot_dimension_numbers<[1], [1], [0], [0], [0, 0, 1, 0], [], []>} : vector<8x8xbf16>, vector<8x8xbf16>, vector<8x8xf32> -> vector<8x8xf32>
    %cst_25 = arith.constant -1.000000e+30 : f32
    %50 = vector.broadcast %cst_25 : f32 to vector<8x8xf32>
    %51 = arith.select %42, %49, %50 : vector<8x8xi1>, vector<8x8xf32>
    %cst_26 = arith.constant dense<0xFF800000> : vector<8xf32>
    %52 = vector.multi_reduction <maximumf>, %51, %cst_26 [1] : vector<8x8xf32> to vector<8xf32>
    %53 = vector.shape_cast %52 : vector<8xf32> to vector<8x1xf32>
    %54 = vector.broadcast %53 : vector<8x1xf32> to vector<8x8xf32>
    %55 = arith.subf %51, %54 : vector<8x8xf32>
    %56 = math.exp %55 : vector<8x8xf32>
    %cst_27 = arith.constant dense<0.000000e+00> : vector<8xf32>
    %57 = vector.multi_reduction <add>, %56, %cst_27 [1] : vector<8x8xf32> to vector<8xf32>
    %58 = vector.shape_cast %57 : vector<8xf32> to vector<8x1xf32>
    %59 = tpu.reciprocal %58 {approx = true} : vector<8x1xf32> -> vector<8x1xf32>
    %60 = vector.broadcast %59 : vector<8x1xf32> to vector<8x8xf32>
    %61 = arith.mulf %56, %60 : vector<8x8xf32>
    %62 = arith.truncf %61 : vector<8x8xf32> to vector<8x8xbf16>
    %cst_28 = arith.constant dense<0.000000e+00> : vector<8x8xf32>
    %63 = tpu.matmul %62, %48, %cst_28 {dimension_numbers = #tpu.dot_dimension_numbers<[1], [0], [0], [1], [0, 0, 1, 1], [], []>} : vector<8x8xbf16>, vector<8x8xbf16>, vector<8x8xf32> -> vector<8x8xf32>
    %64 = arith.truncf %63 : vector<8x8xf32> to vector<8x8xbf16>
    %c0_29 = arith.constant 0 : index
    %c0_30 = arith.constant 0 : index
    %65 = vector.load %arg18[%c0_29, %c0_30] : memref<8x32xbf16, #tpu.memory_space<vmem>>, vector<8x8xbf16>
    tpu.vector_store %arg18[%c0_29, %c0_30], %64 {strides = array<i32>} : memref<8x32xbf16, #tpu.memory_space<vmem>>, vector<8x8xbf16>,
    %66 = vector.extract_strided_slice %33 {offsets = [0, 8], sizes = [8, 8], strides = [1, 1]} : vector<8x32xf32> to vector<8x8xf32>
    %cst_31 = arith.constant 0.353553385 : f32
    %67 = vector.broadcast %cst_31 : f32 to vector<8x8xf32>
    %68 = arith.mulf %66, %67 : vector<8x8xf32>
    %69 = arith.truncf %68 : vector<8x8xf32> to vector<8x8xbf16>
    %c0_32 = arith.constant 0 : index
    %c8 = arith.constant 8 : index
    %70 = vector.load %arg16[%c0_32, %c8] : memref<8x32xbf16, #tpu.memory_space<vmem>>, vector<8x8xbf16>
    %c0_33 = arith.constant 0 : index
    %c8_34 = arith.constant 8 : index
    %71 = vector.load %arg17[%c0_33, %c8_34] : memref<8x32xbf16, #tpu.memory_space<vmem>>, vector<8x8xbf16>
    %cst_35 = arith.constant dense<0.000000e+00> : vector<8x8xf32>
    %72 = tpu.matmul %69, %70, %cst_35 {dimension_numbers = #tpu.dot_dimension_numbers<[1], [1], [0], [0], [0, 0, 1, 0], [], []>} : vector<8x8xbf16>, vector<8x8xbf16>, vector<8x8xf32> -> vector<8x8xf32>
    %cst_36 = arith.constant -1.000000e+30 : f32
    %73 = vector.broadcast %cst_36 : f32 to vector<8x8xf32>
    %74 = arith.select %42, %72, %73 : vector<8x8xi1>, vector<8x8xf32>
    %cst_37 = arith.constant dense<0xFF800000> : vector<8xf32>
    %75 = vector.multi_reduction <maximumf>, %74, %cst_37 [1] : vector<8x8xf32> to vector<8xf32>
    %76 = vector.shape_cast %75 : vector<8xf32> to vector<8x1xf32>
    %77 = vector.broadcast %76 : vector<8x1xf32> to vector<8x8xf32>
    %78 = arith.subf %74, %77 : vector<8x8xf32>
    %79 = math.exp %78 : vector<8x8xf32>
    %cst_38 = arith.constant dense<0.000000e+00> : vector<8xf32>
    %80 = vector.multi_reduction <add>, %79, %cst_38 [1] : vector<8x8xf32> to vector<8xf32>
    %81 = vector.shape_cast %80 : vector<8xf32> to vector<8x1xf32>
    %82 = tpu.reciprocal %81 {approx = true} : vector<8x1xf32> -> vector<8x1xf32>
    %83 = vector.broadcast %82 : vector<8x1xf32> to vector<8x8xf32>
    %84 = arith.mulf %79, %83 : vector<8x8xf32>
    %85 = arith.truncf %84 : vector<8x8xf32> to vector<8x8xbf16>
    %cst_39 = arith.constant dense<0.000000e+00> : vector<8x8xf32>
    %86 = tpu.matmul %85, %71, %cst_39 {dimension_numbers = #tpu.dot_dimension_numbers<[1], [0], [0], [1], [0, 0, 1, 1], [], []>} : vector<8x8xbf16>, vector<8x8xbf16>, vector<8x8xf32> -> vector<8x8xf32>
    %87 = arith.truncf %86 : vector<8x8xf32> to vector<8x8xbf16>
    %c0_40 = arith.constant 0 : index
    %c8_41 = arith.constant 8 : index
    %88 = vector.load %arg18[%c0_40, %c8_41] : memref<8x32xbf16, #tpu.memory_space<vmem>>, vector<8x8xbf16>
    tpu.vector_store %arg18[%c0_40, %c8_41], %87 {strides = array<i32>} : memref<8x32xbf16, #tpu.memory_space<vmem>>, vector<8x8xbf16>,
    %89 = vector.extract_strided_slice %33 {offsets = [0, 16], sizes = [8, 8], strides = [1, 1]} : vector<8x32xf32> to vector<8x8xf32>
    %cst_42 = arith.constant 0.353553385 : f32
    %90 = vector.broadcast %cst_42 : f32 to vector<8x8xf32>
    %91 = arith.mulf %89, %90 : vector<8x8xf32>
    %92 = arith.truncf %91 : vector<8x8xf32> to vector<8x8xbf16>
    %c0_43 = arith.constant 0 : index
    %c16 = arith.constant 16 : index
    %93 = vector.load %arg16[%c0_43, %c16] : memref<8x32xbf16, #tpu.memory_space<vmem>>, vector<8x8xbf16>
    %c0_44 = arith.constant 0 : index
    %c16_45 = arith.constant 16 : index
    %94 = vector.load %arg17[%c0_44, %c16_45] : memref<8x32xbf16, #tpu.memory_space<vmem>>, vector<8x8xbf16>
    %cst_46 = arith.constant dense<0.000000e+00> : vector<8x8xf32>
    %95 = tpu.matmul %92, %93, %cst_46 {dimension_numbers = #tpu.dot_dimension_numbers<[1], [1], [0], [0], [0, 0, 1, 0], [], []>} : vector<8x8xbf16>, vector<8x8xbf16>, vector<8x8xf32> -> vector<8x8xf32>
    %cst_47 = arith.constant -1.000000e+30 : f32
    %96 = vector.broadcast %cst_47 : f32 to vector<8x8xf32>
    %97 = arith.select %42, %95, %96 : vector<8x8xi1>, vector<8x8xf32>
    %cst_48 = arith.constant dense<0xFF800000> : vector<8xf32>
    %98 = vector.multi_reduction <maximumf>, %97, %cst_48 [1] : vector<8x8xf32> to vector<8xf32>
    %99 = vector.shape_cast %98 : vector<8xf32> to vector<8x1xf32>
    %100 = vector.broadcast %99 : vector<8x1xf32> to vector<8x8xf32>
    %101 = arith.subf %97, %100 : vector<8x8xf32>
    %102 = math.exp %101 : vector<8x8xf32>
    %cst_49 = arith.constant dense<0.000000e+00> : vector<8xf32>
    %103 = vector.multi_reduction <add>, %102, %cst_49 [1] : vector<8x8xf32> to vector<8xf32>
    %104 = vector.shape_cast %103 : vector<8xf32> to vector<8x1xf32>
    %105 = tpu.reciprocal %104 {approx = true} : vector<8x1xf32> -> vector<8x1xf32>
    %106 = vector.broadcast %105 : vector<8x1xf32> to vector<8x8xf32>
    %107 = arith.mulf %102, %106 : vector<8x8xf32>
    %108 = arith.truncf %107 : vector<8x8xf32> to vector<8x8xbf16>
    %cst_50 = arith.constant dense<0.000000e+00> : vector<8x8xf32>
    %109 = tpu.matmul %108, %94, %cst_50 {dimension_numbers = #tpu.dot_dimension_numbers<[1], [0], [0], [1], [0, 0, 1, 1], [], []>} : vector<8x8xbf16>, vector<8x8xbf16>, vector<8x8xf32> -> vector<8x8xf32>
    %110 = arith.truncf %109 : vector<8x8xf32> to vector<8x8xbf16>
    %c0_51 = arith.constant 0 : index
    %c16_52 = arith.constant 16 : index
    %111 = vector.load %arg18[%c0_51, %c16_52] : memref<8x32xbf16, #tpu.memory_space<vmem>>, vector<8x8xbf16>
    tpu.vector_store %arg18[%c0_51, %c16_52], %110 {strides = array<i32>} : memref<8x32xbf16, #tpu.memory_space<vmem>>, vector<8x8xbf16>,
    %112 = vector.extract_strided_slice %33 {offsets = [0, 24], sizes = [8, 8], strides = [1, 1]} : vector<8x32xf32> to vector<8x8xf32>
    %cst_53 = arith.constant 0.353553385 : f32
    %113 = vector.broadcast %cst_53 : f32 to vector<8x8xf32>
    %114 = arith.mulf %112, %113 : vector<8x8xf32>
    %115 = arith.truncf %114 : vector<8x8xf32> to vector<8x8xbf16>
    %c0_54 = arith.constant 0 : index
    %c24 = arith.constant 24 : index
    %116 = vector.load %arg16[%c0_54, %c24] : memref<8x32xbf16, #tpu.memory_space<vmem>>, vector<8x8xbf16>
    %c0_55 = arith.constant 0 : index
    %c24_56 = arith.constant 24 : index
    %117 = vector.load %arg17[%c0_55, %c24_56] : memref<8x32xbf16, #tpu.memory_space<vmem>>, vector<8x8xbf16>
    %cst_57 = arith.constant dense<0.000000e+00> : vector<8x8xf32>
    %118 = tpu.matmul %115, %116, %cst_57 {dimension_numbers = #tpu.dot_dimension_numbers<[1], [1], [0], [0], [0, 0, 1, 0], [], []>} : vector<8x8xbf16>, vector<8x8xbf16>, vector<8x8xf32> -> vector<8x8xf32>
    %cst_58 = arith.constant -1.000000e+30 : f32
    %119 = vector.broadcast %cst_58 : f32 to vector<8x8xf32>
    %120 = arith.select %42, %118, %119 : vector<8x8xi1>, vector<8x8xf32>
    %cst_59 = arith.constant dense<0xFF800000> : vector<8xf32>
    %121 = vector.multi_reduction <maximumf>, %120, %cst_59 [1] : vector<8x8xf32> to vector<8xf32>
    %122 = vector.shape_cast %121 : vector<8xf32> to vector<8x1xf32>
    %123 = vector.broadcast %122 : vector<8x1xf32> to vector<8x8xf32>
    %124 = arith.subf %120, %123 : vector<8x8xf32>
    %125 = math.exp %124 : vector<8x8xf32>
    %cst_60 = arith.constant dense<0.000000e+00> : vector<8xf32>
    %126 = vector.multi_reduction <add>, %125, %cst_60 [1] : vector<8x8xf32> to vector<8xf32>
    %127 = vector.shape_cast %126 : vector<8xf32> to vector<8x1xf32>
    %128 = tpu.reciprocal %127 {approx = true} : vector<8x1xf32> -> vector<8x1xf32>
    %129 = vector.broadcast %128 : vector<8x1xf32> to vector<8x8xf32>
    %130 = arith.mulf %125, %129 : vector<8x8xf32>
    %131 = arith.truncf %130 : vector<8x8xf32> to vector<8x8xbf16>
    %cst_61 = arith.constant dense<0.000000e+00> : vector<8x8xf32>
    %132 = tpu.matmul %131, %117, %cst_61 {dimension_numbers = #tpu.dot_dimension_numbers<[1], [0], [0], [1], [0, 0, 1, 1], [], []>} : vector<8x8xbf16>, vector<8x8xbf16>, vector<8x8xf32> -> vector<8x8xf32>
    %133 = arith.truncf %132 : vector<8x8xf32> to vector<8x8xbf16>
    %c0_62 = arith.constant 0 : index
    %c24_63 = arith.constant 24 : index
    %134 = vector.load %arg18[%c0_62, %c24_63] : memref<8x32xbf16, #tpu.memory_space<vmem>>, vector<8x8xbf16>
    tpu.vector_store %arg18[%c0_62, %c24_63], %133 {strides = array<i32>} : memref<8x32xbf16, #tpu.memory_space<vmem>>, vector<8x8xbf16>,
    %c0_64 = arith.constant 0 : index
    %c0_65 = arith.constant 0 : index
    %135 = vector.load %arg18[%c0_64, %c0_65] : memref<8x32xbf16, #tpu.memory_space<vmem>>, vector<8x32xbf16>
    %c0_66 = arith.constant 0 : index
    %c0_67 = arith.constant 0 : index
    %136 = vector.load %arg7[%c0_66, %c0_67] : memref<32x32xbf16, #tpu.memory_space<vmem>>, vector<32x32xbf16>
    %cst_68 = arith.constant dense<0.000000e+00> : vector<8x32xf32>
    %137 = tpu.matmul %135, %136, %cst_68 {dimension_numbers = #tpu.dot_dimension_numbers<[1], [0], [0], [1], [0, 0, 1, 1], [], []>} : vector<8x32xbf16>, vector<32x32xbf16>, vector<8x32xf32> -> vector<8x32xf32>
    %c0_69 = arith.constant 0 : index
    %c0_70 = arith.constant 0 : index
    %138 = vector.load %arg8[%c0_69, %c0_70] : memref<1x32xf32, #tpu.memory_space<vmem>>, vector<1x32xf32>
    %139 = vector.broadcast %138 : vector<1x32xf32> to vector<8x32xf32>
    %140 = arith.addf %137, %139 : vector<8x32xf32>
    %141 = arith.addf %2, %140 : vector<8x32xf32>
    %c0_71 = arith.constant 0 : index
    %c0_72 = arith.constant 0 : index
    %142 = vector.load %arg9[%c0_71, %c0_72] : memref<1x32xf32, #tpu.memory_space<vmem>>, vector<1x32xf32>
    %c0_73 = arith.constant 0 : index
    %c0_74 = arith.constant 0 : index
    %143 = vector.load %arg10[%c0_73, %c0_74] : memref<1x32xf32, #tpu.memory_space<vmem>>, vector<1x32xf32>
    %cst_75 = arith.constant dense<0.000000e+00> : vector<8xf32>
    %144 = vector.multi_reduction <add>, %141, %cst_75 [1] : vector<8x32xf32> to vector<8xf32>
    %145 = vector.shape_cast %144 : vector<8xf32> to vector<8x1xf32>
    %cst_76 = arith.constant 3.200000e+01 : f32
    %146 = vector.broadcast %cst_76 : f32 to vector<8x1xf32>
    %147 = arith.divf %145, %146 : vector<8x1xf32>
    %148 = vector.broadcast %147 : vector<8x1xf32> to vector<8x32xf32>
    %149 = arith.subf %141, %148 : vector<8x32xf32>
    %150 = arith.mulf %149, %149 : vector<8x32xf32>
    %cst_77 = arith.constant dense<0.000000e+00> : vector<8xf32>
    %151 = vector.multi_reduction <add>, %150, %cst_77 [1] : vector<8x32xf32> to vector<8xf32>
    %152 = vector.shape_cast %151 : vector<8xf32> to vector<8x1xf32>
    %cst_78 = arith.constant 3.200000e+01 : f32
    %153 = vector.broadcast %cst_78 : f32 to vector<8x1xf32>
    %154 = arith.divf %152, %153 : vector<8x1xf32>
    %155 = vector.broadcast %147 : vector<8x1xf32> to vector<8x32xf32>
    %156 = arith.subf %141, %155 : vector<8x32xf32>
    %cst_79 = arith.constant 9.99999974E-6 : f32
    %157 = vector.broadcast %cst_79 : f32 to vector<8x1xf32>
    %158 = arith.addf %154, %157 : vector<8x1xf32>
    %159 = math.rsqrt %158 : vector<8x1xf32>
    %160 = vector.broadcast %159 : vector<8x1xf32> to vector<8x32xf32>
    %161 = arith.mulf %156, %160 : vector<8x32xf32>
    %162 = vector.broadcast %142 : vector<1x32xf32> to vector<8x32xf32>
    %163 = arith.mulf %161, %162 : vector<8x32xf32>
    %164 = vector.broadcast %143 : vector<1x32xf32> to vector<8x32xf32>
    %165 = arith.addf %163, %164 : vector<8x32xf32>
    %166 = arith.truncf %165 : vector<8x32xf32> to vector<8x32xbf16>
    %c0_80 = arith.constant 0 : index
    %c0_81 = arith.constant 0 : index
    %167 = vector.load %arg11[%c0_80, %c0_81] : memref<32x128xbf16, #tpu.memory_space<vmem>>, vector<32x128xbf16>
    %cst_82 = arith.constant dense<0.000000e+00> : vector<8x128xf32>
    %168 = tpu.matmul %166, %167, %cst_82 {dimension_numbers = #tpu.dot_dimension_numbers<[1], [0], [0], [1], [0, 0, 1, 1], [], []>} : vector<8x32xbf16>, vector<32x128xbf16>, vector<8x128xf32> -> vector<8x128xf32>
    %c0_83 = arith.constant 0 : index
    %c0_84 = arith.constant 0 : index
    %169 = vector.load %arg12[%c0_83, %c0_84] : memref<1x128xf32, #tpu.memory_space<vmem>>, vector<1x128xf32>
    %170 = vector.broadcast %169 : vector<1x128xf32> to vector<8x128xf32>
    %171 = arith.addf %168, %170 : vector<8x128xf32>
    %cst_85 = arith.constant 1.702000e+00 : f32
    %172 = vector.broadcast %cst_85 : f32 to vector<8x128xf32>
    %173 = arith.mulf %172, %171 : vector<8x128xf32>
    %174 = arith.negf %173 : vector<8x128xf32>
    %175 = math.exp %174 : vector<8x128xf32>
    %cst_86 = arith.constant 1.000000e+00 : f32
    %176 = vector.broadcast %cst_86 : f32 to vector<8x128xf32>
    %177 = arith.addf %176, %175 : vector<8x128xf32>
    %178 = arith.divf %176, %177 : vector<8x128xf32>
    %179 = arith.mulf %171, %178 : vector<8x128xf32>
    %180 = arith.truncf %179 : vector<8x128xf32> to vector<8x128xbf16>
    %c0_87 = arith.constant 0 : index
    %c0_88 = arith.constant 0 : index
    %181 = vector.load %arg13[%c0_87, %c0_88] : memref<128x32xbf16, #tpu.memory_space<vmem>>, vector<128x32xbf16>
    %cst_89 = arith.constant dense<0.000000e+00> : vector<8x32xf32>
    %182 = tpu.matmul %180, %181, %cst_89 {dimension_numbers = #tpu.dot_dimension_numbers<[1], [0], [0], [1], [0, 0, 1, 1], [], []>} : vector<8x128xbf16>, vector<128x32xbf16>, vector<8x32xf32> -> vector<8x32xf32>
    %c0_90 = arith.constant 0 : index
    %c0_91 = arith.constant 0 : index
    %183 = vector.load %arg14[%c0_90, %c0_91] : memref<1x32xf32, #tpu.memory_space<vmem>>, vector<1x32xf32>
    %184 = vector.broadcast %183 : vector<1x32xf32> to vector<8x32xf32>
    %185 = arith.addf %182, %184 : vector<8x32xf32>
    %186 = arith.addf %141, %185 : vector<8x32xf32>
    %187 = arith.truncf %186 : vector<8x32xf32> to vector<8x32xbf16>
    %c0_92 = arith.constant 0 : index
    %c0_93 = arith.constant 0 : index
    %c0_94 = arith.constant 0 : index
    %188 = vector.load %arg15[%c0_92, %c0_93, %c0_94] : memref<1x8x32xbf16, #tpu.memory_space<vmem>>, vector<1x8x32xbf16>
    %189 = vector.shape_cast %188 : vector<1x8x32xbf16> to vector<8x32xbf16>
    %190 = vector.shape_cast %187 : vector<8x32xbf16> to vector<1x8x32xbf16>
    tpu.vector_store %arg15[%c0_92, %c0_93, %c0_94], %190 {strides = array<i32>} : memref<1x8x32xbf16, #tpu.memory_space<vmem>>, vector<1x8x32xbf16>,
    return
  }
  func.func @transform_0(%arg0: i32, %arg1: i32) -> (i32, i32, i32) {
    %c0_i32 = arith.constant 0 : i32
    %c0_i32_0 = arith.constant 0 : i32
    %c0_i32_1 = arith.constant 0 : i32
    return %arg0, %c0_i32, %c0_i32_0 : i32, i32, i32
  }
  func.func @transform_1(%arg0: i32, %arg1: i32) -> (i32, i32) {
    %c0_i32 = arith.constant 0 : i32
    %c0_i32_0 = arith.constant 0 : i32
    %c0_i32_1 = arith.constant 0 : i32
    return %c0_i32, %c0_i32_0 : i32, i32
  }
  func.func @transform_2(%arg0: i32, %arg1: i32) -> (i32, i32) {
    %c0_i32 = arith.constant 0 : i32
    %c0_i32_0 = arith.constant 0 : i32
    %c0_i32_1 = arith.constant 0 : i32
    return %c0_i32, %c0_i32_0 : i32, i32
  }
  func.func @transform_3(%arg0: i32, %arg1: i32) -> (i32, i32) {
    %c0_i32 = arith.constant 0 : i32
    %c0_i32_0 = arith.constant 0 : i32
    %c0_i32_1 = arith.constant 0 : i32
    return %c0_i32, %c0_i32_0 : i32, i32
  }
  func.func @transform_4(%arg0: i32, %arg1: i32) -> (i32, i32) {
    %c0_i32 = arith.constant 0 : i32
    %c0_i32_0 = arith.constant 0 : i32
    %c0_i32_1 = arith.constant 0 : i32
    return %c0_i32, %c0_i32_0 : i32, i32
  }
  func.func @transform_5(%arg0: i32, %arg1: i32) -> (i32, i32) {
    %c0_i32 = arith.constant 0 : i32
    %c0_i32_0 = arith.constant 0 : i32
    %c0_i32_1 = arith.constant 0 : i32
    return %c0_i32, %c0_i32_0 : i32, i32
  }
  func.func @transform_6(%arg0: i32, %arg1: i32) -> (i32, i32) {
    %c0_i32 = arith.constant 0 : i32
    %c0_i32_0 = arith.constant 0 : i32
    %c0_i32_1 = arith.constant 0 : i32
    return %c0_i32, %c0_i32_0 : i32, i32
  }
  func.func @transform_7(%arg0: i32, %arg1: i32) -> (i32, i32) {
    %c0_i32 = arith.constant 0 : i32
    %c0_i32_0 = arith.constant 0 : i32
    %c0_i32_1 = arith.constant 0 : i32
    return %c0_i32, %c0_i32_0 : i32, i32
  }
  func.func @transform_8(%arg0: i32, %arg1: i32) -> (i32, i32) {
    %c0_i32 = arith.constant 0 : i32
    %c0_i32_0 = arith.constant 0 : i32
    %c0_i32_1 = arith.constant 0 : i32
    return %c0_i32, %c0_i32_0 : i32, i32
  }
  func.func @transform_9(%arg0: i32, %arg1: i32) -> (i32, i32) {
    %c0_i32 = arith.constant 0 : i32
    %c0_i32_0 = arith.constant 0 : i32
    %c0_i32_1 = arith.constant 0 : i32
    return %c0_i32, %c0_i32_0 : i32, i32
  }
  func.func @transform_10(%arg0: i32, %arg1: i32) -> (i32, i32) {
    %c0_i32 = arith.constant 0 : i32
    %c0_i32_0 = arith.constant 0 : i32
    %c0_i32_1 = arith.constant 0 : i32
    return %c0_i32, %c0_i32_0 : i32, i32
  }
  func.func @transform_11(%arg0: i32, %arg1: i32) -> (i32, i32) {
    %c0_i32 = arith.constant 0 : i32
    %c0_i32_0 = arith.constant 0 : i32
    %c0_i32_1 = arith.constant 0 : i32
    return %c0_i32, %c0_i32_0 : i32, i32
  }
  func.func @transform_12(%arg0: i32, %arg1: i32) -> (i32, i32) {
    %c0_i32 = arith.constant 0 : i32
    %c0_i32_0 = arith.constant 0 : i32
    %c0_i32_1 = arith.constant 0 : i32
    return %c0_i32, %c0_i32_0 : i32, i32
  }
  func.func @transform_13(%arg0: i32, %arg1: i32) -> (i32, i32, i32) {
    %c0_i32 = arith.constant 0 : i32
    %c0_i32_0 = arith.constant 0 : i32
    return %arg0, %arg1, %c0_i32 : i32, i32, i32
  }
}

</mosaic_0001>

<llo_original>
// kernel: vision_transformer_forward.7
$region0: #{vision_transformer_forward.7}
  #allocation0 [shape = 'u32[]', space=smem, size = 0x4, offset = 0x4, fixed_abs, tag = 'smem constant byte address 0x4 - core index']
  #allocation1 [shape = 'u32[144,128]{1,0:T(1,128)}', space=vmem, size = 0x12000, scoped, tag = 'internal scratch']
  %s0 = inlined_call_operand.vmem [shape: bf16[2,32], index: 0, kind: input, shape index: {}]
  %s1 = inlined_call_operand.vmem [shape: f32[1,32], index: 1, kind: input, shape index: {}]
  %s2 = inlined_call_operand.vmem [shape: f32[1,32], index: 2, kind: input, shape index: {}]
  %s3 = inlined_call_operand.vmem [shape: bf16[32,16], index: 3, kind: input, shape index: {}]
  %s4 = inlined_call_operand.hbm [shape: f32[2,16], index: 4, kind: output, shape index: {}]
  %s5 = sld [smem:[#allocation0]]
  $region26: #{vision_transformer_forward.7} parent=0
    _
  %s7 = ssub.s32 1, %s5
  %s8 = scalar_select 0, %s7, %s5
  $region1: #{vision_transformer_forward.7} parent=0
    #allocation2 [shape = 'u8[1024]{0}', space=vmem, size = 0x400, scoped, tag = 'output window, operand 0, single buffered']
    #allocation3 [shape = 's32[1]{0}', space=sflag, size = 0x4, scoped, tag = 'scoped memory for vision_transformer_forward.7']
    %9 = vsyncpa [#allocation3], 0
    // Predicated region
    $region2: #{vision_transformer_forward.7} parent=1 // pred_check
      _
    $region3: #{vision_transformer_forward.7} parent=1 // pred_check_branch
      %11 = sbr.rel (0) target = $region5
    $region4: #{vision_transformer_forward.7} parent=1 // pred_region
      _
    $region5: #{vision_transformer_forward.7} parent=1 // pred_fallthru
      _
    // Predicated region
    $region6: #{vision_transformer_forward.7} parent=1 // pred_check
      _
    $region7: #{vision_transformer_forward.7} parent=1 // pred_check_branch
      %13 = sbr.rel (0) target = $region9
    $region8: #{vision_transformer_forward.7} parent=1 // pred_region
      _
    $region9: #{vision_transformer_forward.7} parent=1 // pred_fallthru
      _
    // Predicated region
    $region10: #{vision_transformer_forward.7} parent=1 // pred_check
      _
    $region11: #{vision_transformer_forward.7} parent=1 // pred_check_branch
      %15 = sbr.rel (0) target = $region13
    $region12: #{vision_transformer_forward.7} parent=1 // pred_region
      _
    $region13: #{vision_transformer_forward.7} parent=1 // pred_fallthru
      _
    // Predicated region
    $region14: #{vision_transformer_forward.7} parent=1 // pred_check
      _
    $region15: #{vision_transformer_forward.7} parent=1 // pred_check_branch
      %17 = sbr.rel (0) target = $region17
    $region16: #{vision_transformer_forward.7} parent=1 // pred_region
      _
    $region17: #{vision_transformer_forward.7} parent=1 // pred_fallthru
      _
    %v19 = vld [vmem:[%s0] sm:$0x1]
    %v20 = vunpack.c.l.bf16 %v19
    %v21 = vld [vmem:[%s1] sm:$0x1]
    %v22 = vld [vmem:[%s2] sm:$0x1]
    %vm23 = vcmask 254976
    %v24 = vsel %vm23, %v20, 0.0
    %25 = vadd.xlane.f32.xlu0 %v24
    %v26 = vpop.xlane.xlu0 %25
    %v27 = vrcp.pop 32.0
    %v28 = vmul.f32 %v26, %v27
    %v29 = vsub.f32 %v20, %v28
    %v30 = vmul.f32 %v29, %v29
    %v31 = vsel %vm23, %v30, 0.0
    %32 = vadd.xlane.f32.xlu0 %v31
    %v33 = vpop.xlane.xlu0 %32
    %v34 = vmul.f32 %v33, %v27
    %v35 = vadd.f32 %v34, 1e-05
    %v36 = vrsqrt.pop %v35
    %v37 = vmul.f32 %v29, %v36
    %v39 = vlaneseq
    %v40 = vshrl.u32 %v39, 7
    %v41 = vsub.s32 0, %v40
    %v42 = vrot.slane %v21, %v41
    %v44 = vmul.f32 %v37, %v42
    %v46 = vlaneseq
    %v47 = vshrl.u32 %v46, 7
    %v48 = vsub.s32 0, %v47
    %v49 = vrot.slane %v22, %v48
    %v51 = vadd.f32 %v44, %v49
    %v52 = vpack.c.bf16 %v51, %v51
    %v53 = vld [vmem:[%s3] sm:$0xf]
    %v54 = vld [vmem:[%s3 + $0x4] sm:$0xf]
    %v55 = vld [vmem:[%s3 + $0x8] sm:$0xf]
    %v56 = vld [vmem:[%s3 + $0xc] sm:$0xf]
    %v61 = vunpack.c.l.b16 %v53
    %v62 = vunpack.c.l.b16 %v54
    %v63 = vunpack.c.l.b16 %v55
    %v64 = vunpack.c.l.b16 %v56
    %v65 = vpack.c.b16 %v62, %v61
    %v66 = vpack.c.b16 %v64, %v63
    %vm69 = vcmask 261120
    %v71 = vsel %vm69, %v52, 0
    %73 = vmatprep.subr.bf16.mxu0 0
    %74 = vmatpush1.bf16.msra.mxu0 %v65
    %75 = vmatprep.subr.bf16.mxu0 0
    %76 = vmatpush1.bf16.msra.mxu0 %v66
    %77 = vmatprep.subr.bf16.mxu0 0
    %78 = vmatpush1.bf16.msra.mxu0 0
    %79 = vmatprep.subr.bf16.mxu0 0
    %80 = vmatpush1.bf16.msra.mxu0 0
    %81 = vmatprep.subr.bf16.mxu0 0
    %82 = vmatpush1.bf16.msra.mxu0 0
    %83 = vmatprep.subr.bf16.mxu0 0
    %84 = vmatpush1.bf16.msra.mxu0 0
    %85 = vmatprep.subr.bf16.mxu0 0
    %86 = vmatpush1.bf16.msra.mxu0 0
    %87 = vmatprep.subr.bf16.mxu0 0
    %88 = vmatpush1.bf16.msra.mxu0 0
    %89 = vmatprep.subr.bf16.mxu0 0
    %90 = vmatpush1.bf16.msra.mxu0 0
    %91 = vmatprep.subr.bf16.mxu0 0
    %92 = vmatpush1.bf16.msra.mxu0 0
    %93 = vmatprep.subr.bf16.mxu0 0
    %94 = vmatpush1.bf16.msra.mxu0 0
    %95 = vmatprep.subr.bf16.mxu0 0
    %96 = vmatpush1.bf16.msra.mxu0 0
    %97 = vmatprep.subr.bf16.mxu0 0
    %98 = vmatpush1.bf16.msra.mxu0 0
    %99 = vmatprep.subr.bf16.mxu0 0
    %100 = vmatpush1.bf16.msra.mxu0 0
    %101 = vmatprep.subr.bf16.mxu0 0
    %102 = vmatpush1.bf16.msra.mxu0 0
    %103 = vmatprep.subr.bf16.mxu0 0
    %104 = vmatpush1.bf16.msra.mxu0 0
    %105 = vmatprep.mubr.bf16.mxu0 0
    %106 = vmatmul.mubr.bf16.gmra.mrb[0].mxu0 %v71
    %v107 = vpop.f32.mrb[0].mxu0
    %v108 = vadd.f32 0.0, %v107
    %v109 = vpop.f32.mrb[0].mxu0
    %v110 = vpop.f32.mrb[0].mxu0
    %v111 = vpop.f32.mrb[0].mxu0
    %112 = vdwg.mxu0
    %vm113 = vcmask 123904
    %114 = vst.msk [vmem:[#allocation2] sm:$0x3] %vm113, %v108
    // Predicated region
    $region18: #{vision_transformer_forward.7} parent=1 // pred_check
      _
    $region19: #{vision_transformer_forward.7} parent=1 // pred_check_branch
      %116 = sbr.rel (0) target = $region21
    $region20: #{vision_transformer_forward.7} parent=1 // pred_region
      %s118 = ssub.s32 32, 32
      %119 = vsyncadd [#allocation3], %s118
      %s121 = sshll.u32 [#allocation2], 4
      %s122 = int_to_ptr.vmem [resolvable:$true] %s121
      %124 = dma.vmem_to_hbm [thread:$0]  %s122, 32, %s4, [#allocation3]
    $region21: #{vision_transformer_forward.7} parent=1 // pred_fallthru
      _
    // Predicated region
    $region22: #{vision_transformer_forward.7} parent=1 // pred_check
      _
    $region23: #{vision_transformer_forward.7} parent=1 // pred_check_branch
      %126 = sbr.rel (0) target = $region25
    $region24: #{vision_transformer_forward.7} parent=1 // pred_region
      %127 = dma.done [#allocation3], 32
    $region25: #{vision_transformer_forward.7} parent=1 // pred_fallthru
      _
    %128 = vsyncpa [#allocation3], 1

// kernel: vision_transformer_forward.4
$region0: #{vision_transformer_forward.4}
  #allocation0 [shape = 'u32[]', space=smem, size = 0x4, offset = 0x4, fixed_abs, tag = 'smem constant byte address 0x4 - core index']
  #allocation1 [shape = 'u32[144,128]{1,0:T(1,128)}', space=vmem, size = 0x12000, scoped, tag = 'internal scratch']
  %s0 = inlined_call_operand.vmem [shape: bf16[2,8,256], index: 0, kind: input, shape index: {}]
  %s1 = inlined_call_operand.vmem [shape: bf16[256,32], index: 1, kind: input, shape index: {}]
  %s2 = inlined_call_operand.vmem [shape: f32[1,32], index: 2, kind: input, shape index: {}]
  %s3 = inlined_call_operand.vmem [shape: f32[8,32], index: 3, kind: input, shape index: {}]
  %s4 = inlined_call_operand.vmem [shape: f32[1,32], index: 4, kind: input, shape index: {}]
  %s5 = inlined_call_operand.vmem [shape: f32[1,32], index: 5, kind: input, shape index: {}]
  %s6 = inlined_call_operand.vmem [shape: bf16[2,8,32], index: 6, kind: output, shape index: {}]
  %s7 = sld [smem:[#allocation0]]
  $region57: #{vision_transformer_forward.4} parent=0
    _
  %s9 = ssub.s32 1, %s7
  %s10 = scalar_select 0, %s9, %s7
  loop: start=0, step=1, limit=4
  $region2: #{vision_transformer_forward.4} parent=0 // loop_pre_header
    _
  $region3: #{vision_transformer_forward.4} parent=0 // loop_header
    %s12 = sphi 0, %s16
    %p13 = scmp.ge.s32.totalorder %s12, 4
    %s22 = sphi 0, %s24
    %s25 = sphi 0, %s22
    %s26 = sphi 0, %s25
    %s42 = sphi 0, %s26
    %s46 = sphi 0, %s46
    %s48 = sphi 0, %s46
    %s49 = sphi 0, %s48
    %s63 = sphi 0, %s49
    %s67 = sphi 0, %s67
    %s69 = sphi 0, %s67
    %s70 = sphi 0, %s69
    %s84 = sphi 0, %s70
    %s88 = sphi 0, %s88
    %s90 = sphi 0, %s88
    %s91 = sphi 0, %s90
    %s105 = sphi 0, %s91
    %s109 = sphi 0, %s109
    %s111 = sphi 0, %s109
    %s112 = sphi 0, %s111
    %s126 = sphi 0, %s112
    %s130 = sphi 0, %s130
    %s132 = sphi 0, %s130
    %s133 = sphi 0, %s132
    %s147 = sphi 0, %s133
    %s153 = sphi 0, %s155
    %s156 = sphi 0, %s153
    %s157 = sphi 0, %s156
    %s173 = sphi 0, %s157
  $region4: #{vision_transformer_forward.4} parent=0 // loop_header_branch
    %15 = sbr.rel (%p13) target = $region8
  $region5: #{vision_transformer_forward.4} parent=0 // loop_body
    %s17 = ssub.s32 %s12, 1
    %s18 = ssub.s32 %s12, 2
    %s19 = sadd.s32 %s12, 1
    %s20 = ssub.s32 %s12, %s19
    %p21 = scmp.eq.s32.totalorder %s20, 0
    %s23 = sadd.s32 %s22, 1
    %s24 = scalar_select %p21, %s22, %s23
    %p27 = pneg %p21
    %p28 = scmp.eq.s32.totalorder %s12, 1
    %p29 = por %p27, %p28
    %p30 = scmp.ne.s32.totalorder %s22, %s25
    %p31 = scmp.eq.s32.totalorder %s12, 0
    %p32 = por %p30, %p31
    %p33 = scmp.ne.s32.totalorder %s22, %s25
    %p34 = scmp.eq.s32.totalorder %s17, 1
    %p35 = por %p33, %p34
    %p36 = scmp.ne.s32.totalorder %s25, %s26
    %p37 = scmp.eq.s32.totalorder %s17, 0
    %p38 = por %p36, %p37
    %p39 = scmp.ne.s32.totalorder %s25, %s26
    %p40 = scmp.eq.s32.totalorder %s18, 1
    %p41 = por %p39, %p40
    %p43 = scmp.ne.s32.totalorder %s26, %s42
    %p44 = scmp.eq.s32.totalorder %s18, 0
    %p45 = por %p43, %p44
    %s47 = sadd.s32 %s46, 1
    %p50 = scmp.eq.s32.totalorder %s12, 1
    %p51 = scmp.ne.s32.totalorder %s46, %s48
    %p52 = scmp.eq.s32.totalorder %s12, 0
    %p53 = por %p51, %p52
    %p54 = scmp.ne.s32.totalorder %s46, %s48
    %p55 = scmp.eq.s32.totalorder %s17, 1
    %p56 = por %p54, %p55
    %p57 = scmp.ne.s32.totalorder %s48, %s49
    %p58 = scmp.eq.s32.totalorder %s17, 0
    %p59 = por %p57, %p58
    %p60 = scmp.ne.s32.totalorder %s48, %s49
    %p61 = scmp.eq.s32.totalorder %s18, 1
    %p62 = por %p60, %p61
    %p64 = scmp.ne.s32.totalorder %s49, %s63
    %p65 = scmp.eq.s32.totalorder %s18, 0
    %p66 = por %p64, %p65
    %s68 = sadd.s32 %s67, 1
    %p71 = scmp.eq.s32.totalorder %s12, 1
    %p72 = scmp.ne.s32.totalorder %s67, %s69
    %p73 = scmp.eq.s32.totalorder %s12, 0
    %p74 = por %p72, %p73
    %p75 = scmp.ne.s32.totalorder %s67, %s69
    %p76 = scmp.eq.s32.totalorder %s17, 1
    %p77 = por %p75, %p76
    %p78 = scmp.ne.s32.totalorder %s69, %s70
    %p79 = scmp.eq.s32.totalorder %s17, 0
    %p80 = por %p78, %p79
    %p81 = scmp.ne.s32.totalorder %s69, %s70
    %p82 = scmp.eq.s32.totalorder %s18, 1
    %p83 = por %p81, %p82
    %p85 = scmp.ne.s32.totalorder %s70, %s84
    %p86 = scmp.eq.s32.totalorder %s18, 0
    %p87 = por %p85, %p86
    %s89 = sadd.s32 %s88, 1
    %p92 = scmp.eq.s32.totalorder %s12, 1
    %p93 = scmp.ne.s32.totalorder %s88, %s90
    %p94 = scmp.eq.s32.totalorder %s12, 0
    %p95 = por %p93, %p94
    %p96 = scmp.ne.s32.totalorder %s88, %s90
    %p97 = scmp.eq.s32.totalorder %s17, 1
    %p98 = por %p96, %p97
    %p99 = scmp.ne.s32.totalorder %s90, %s91
    %p100 = scmp.eq.s32.totalorder %s17, 0
    %p101 = por %p99, %p100
    %p102 = scmp.ne.s32.totalorder %s90, %s91
    %p103 = scmp.eq.s32.totalorder %s18, 1
    %p104 = por %p102, %p103
    %p106 = scmp.ne.s32.totalorder %s91, %s105
    %p107 = scmp.eq.s32.totalorder %s18, 0
    %p108 = por %p106, %p107
    %s110 = sadd.s32 %s109, 1
    %p113 = scmp.eq.s32.totalorder %s12, 1
    %p114 = scmp.ne.s32.totalorder %s109, %s111
    %p115 = scmp.eq.s32.totalorder %s12, 0
    %p116 = por %p114, %p115
    %p117 = scmp.ne.s32.totalorder %s109, %s111
    %p118 = scmp.eq.s32.totalorder %s17, 1
    %p119 = por %p117, %p118
    %p120 = scmp.ne.s32.totalorder %s111, %s112
    %p121 = scmp.eq.s32.totalorder %s17, 0
    %p122 = por %p120, %p121
    %p123 = scmp.ne.s32.totalorder %s111, %s112
    %p124 = scmp.eq.s32.totalorder %s18, 1
    %p125 = por %p123, %p124
    %p127 = scmp.ne.s32.totalorder %s112, %s126
    %p128 = scmp.eq.s32.totalorder %s18, 0
    %p129 = por %p127, %p128
    %s131 = sadd.s32 %s130, 1
    %p134 = scmp.eq.s32.totalorder %s12, 1
    %p135 = scmp.ne.s32.totalorder %s130, %s132
    %p136 = scmp.eq.s32.totalorder %s12, 0
    %p137 = por %p135, %p136
    %p138 = scmp.ne.s32.totalorder %s130, %s132
    %p139 = scmp.eq.s32.totalorder %s17, 1
    %p140 = por %p138, %p139
    %p141 = scmp.ne.s32.totalorder %s132, %s133
    %p142 = scmp.eq.s32.totalorder %s17, 0
    %p143 = por %p141, %p142
    %p144 = scmp.ne.s32.totalorder %s132, %s133
    %p145 = scmp.eq.s32.totalorder %s18, 1
    %p146 = por %p144, %p145
    %p148 = scmp.ne.s32.totalorder %s133, %s147
    %p149 = scmp.eq.s32.totalorder %s18, 0
    %p150 = por %p148, %p149
    %s151 = ssub.s32 %s12, %s19
    %p152 = scmp.eq.s32.totalorder %s151, 0
    %s154 = sadd.s32 %s153, 1
    %s155 = scalar_select %p152, %s153, %s154
    %p158 = pneg %p152
    %p159 = scmp.eq.s32.totalorder %s12, 1
    %p160 = por %p158, %p159
    %p161 = scmp.ne.s32.totalorder %s153, %s156
    %p162 = scmp.eq.s32.totalorder %s12, 0
    %p163 = por %p161, %p162
    %p164 = scmp.ne.s32.totalorder %s153, %s156
    %p165 = scmp.eq.s32.totalorder %s17, 1
    %p166 = por %p164, %p165
    %p167 = scmp.ne.s32.totalorder %s156, %s157
    %p168 = scmp.eq.s32.totalorder %s17, 0
    %p169 = por %p167, %p168
    %p170 = scmp.ne.s32.totalorder %s156, %s157
    %p171 = scmp.eq.s32.totalorder %s18, 1
    %p172 = por %p170, %p171
    %p174 = scmp.ne.s32.totalorder %s157, %s173
    %p175 = scmp.eq.s32.totalorder %s18, 0
    %p176 = por %p174, %p175
    %p177 = scmp.le.s32.totalorder 1, %s12
    %p178 = scmp.lt.s32.totalorder %s12, 3
    %p179 = pnand %p177, %p178
    %p180 = pneg %p179
    // Predicated region
    $region9: #{vision_transformer_forward.4} parent=5 // pred_check
      _
    $region10: #{vision_transformer_forward.4} parent=5 // pred_check_branch
      %182 = sbr.rel (%p179) target = $region12
    $region11: #{vision_transformer_forward.4} parent=5 // pred_region
      %s183 = ssub.s32 %s12, 1
      // Predicated region
      $region13: #{vision_transformer_forward.4} parent=11 // pred_check
        %p184 = pneg %p59
      $region14: #{vision_transformer_forward.4} parent=11 // pred_check_branch
        %186 = sbr.rel (%p184) target = $region16
      $region15: #{vision_transformer_forward.4} parent=11 // pred_region
        _
      $region16: #{vision_transformer_forward.4} parent=11 // pred_fallthru
        _
      // Predicated region
      $region17: #{vision_transformer_forward.4} parent=11 // pred_check
        %p187 = pneg %p80
      $region18: #{vision_transformer_forward.4} parent=11 // pred_check_branch
        %189 = sbr.rel (%p187) target = $region20
      $region19: #{vision_transformer_forward.4} parent=11 // pred_region
        _
      $region20: #{vision_transformer_forward.4} parent=11 // pred_fallthru
        _
      // Predicated region
      $region21: #{vision_transformer_forward.4} parent=11 // pred_check
        %p190 = pneg %p101
      $region22: #{vision_transformer_forward.4} parent=11 // pred_check_branch
        %192 = sbr.rel (%p190) target = $region24
      $region23: #{vision_transformer_forward.4} parent=11 // pred_region
        _
      $region24: #{vision_transformer_forward.4} parent=11 // pred_fallthru
        _
      // Predicated region
      $region25: #{vision_transformer_forward.4} parent=11 // pred_check
        %p193 = pneg %p122
      $region26: #{vision_transformer_forward.4} parent=11 // pred_check_branch
        %195 = sbr.rel (%p193) target = $region28
      $region27: #{vision_transformer_forward.4} parent=11 // pred_region
        _
      $region28: #{vision_transformer_forward.4} parent=11 // pred_fallthru
        _
      // Predicated region
      $region29: #{vision_transformer_forward.4} parent=11 // pred_check
        %p196 = pneg %p143
      $region30: #{vision_transformer_forward.4} parent=11 // pred_check_branch
        %198 = sbr.rel (%p196) target = $region32
      $region31: #{vision_transformer_forward.4} parent=11 // pred_region
        _
      $region32: #{vision_transformer_forward.4} parent=11 // pred_fallthru
        _
    $region12: #{vision_transformer_forward.4} parent=5 // pred_fallthru
      _
    %p199 = scmp.lt.s32.totalorder %s12, 2
    // Predicated region
    $region33: #{vision_transformer_forward.4} parent=5 // pred_check
      %p200 = pneg %p199
    $region34: #{vision_transformer_forward.4} parent=5 // pred_check_branch
      %202 = sbr.rel (%p200) target = $region36
    $region35: #{vision_transformer_forward.4} parent=5 // pred_region
      // Predicated region
      $region37: #{vision_transformer_forward.4} parent=35 // pred_check
        %p203 = pneg %p32
      $region38: #{vision_transformer_forward.4} parent=35 // pred_check_branch
        %205 = sbr.rel (%p203) target = $region40
      $region39: #{vision_transformer_forward.4} parent=35 // pred_region
        %p206 = scmp.lt.s32.totalorder %s12, 1
        %s207 = scalar_select %p206, %s12, 1
        %s208 = smul.addr %s207, 2
        %s209 = smul.addr %s208, 4
        %s210 = scalar_lea.vmem %s0, %s209
      $region40: #{vision_transformer_forward.4} parent=35 // pred_fallthru
        _
    $region36: #{vision_transformer_forward.4} parent=5 // pred_fallthru
      _
    %p211 = scmp.le.s32.totalorder 1, %s12
    %p212 = scmp.lt.s32.totalorder %s12, 3
    %p213 = pnand %p211, %p212
    %p214 = pneg %p213
    // Predicated region
    $region41: #{vision_transformer_forward.4} parent=5 // pred_check
      _
    $region42: #{vision_transformer_forward.4} parent=5 // pred_check_branch
      %216 = sbr.rel (%p213) target = $region44
    $region43: #{vision_transformer_forward.4} parent=5 // pred_region
      %s217 = ssub.s32 %s12, 1
      %p218 = scmp.lt.s32.totalorder %s17, 1
      %s219 = scalar_select %p218, %s17, 1
      %s220 = smul.addr %s219, 2
      %s221 = smul.addr %s220, 4
      %s222 = scalar_lea.vmem %s0, %s221
      %p223 = pneg %p38
      %p224 = pneg %p35
      %p225 = pneg %p59
      %p226 = pneg %p56
      %p227 = pneg %p80
      %p228 = pneg %p77
      %p229 = pneg %p101
      %p230 = pneg %p98
      %p231 = pneg %p122
      %p232 = pneg %p119
      %p233 = pneg %p143
      %p234 = pneg %p140
      %p235 = pneg %p169
      %p236 = pneg %p166
      %p237 = scmp.lt.s32.totalorder %s17, 1
      %s238 = scalar_select %p237, %s17, 1
      %s239 = smul.addr %s238, 4
      %s240 = scalar_lea.vmem %s6, %s239
      %p241 = scmp.lt.s32.totalorder %s17, 1
      %s242 = scalar_select %p241, %s17, 1
      %s243 = smul.addr %s242, 2
      %s244 = smul.addr %s243, 4
      %s245 = scalar_lea.vmem %s0, %s244
      %p246 = scmp.lt.s32.totalorder %s17, 1
      %s247 = scalar_select %p246, %s17, 1
      %s248 = smul.addr %s247, 4
      %s249 = scalar_lea.vmem %s6, %s248
      %v251 = vld [vmem:[%s245] sm:$0xff]
      %v252 = vld [vmem:[%s1] sm:$0xf]
      %v253 = vld [vmem:[%s1 + $0x4] sm:$0xf]
      %v254 = vld [vmem:[%s1 + $0x8] sm:$0xf]
      %v255 = vld [vmem:[%s1 + $0xc] sm:$0xf]
      %v256 = vld [vmem:[%s1 + $0x10] sm:$0xf]
      %v257 = vld [vmem:[%s1 + $0x14] sm:$0xf]
      %v258 = vld [vmem:[%s1 + $0x18] sm:$0xf]
      %v259 = vld [vmem:[%s1 + $0x1c] sm:$0xf]
      %v260 = vld [vmem:[%s1 + $0x20] sm:$0xf]
      %v261 = vld [vmem:[%s1 + $0x24] sm:$0xf]
      %v262 = vld [vmem:[%s1 + $0x28] sm:$0xf]
      %v263 = vld [vmem:[%s1 + $0x2c] sm:$0xf]
      %v264 = vld [vmem:[%s1 + $0x30] sm:$0xf]
      %v265 = vld [vmem:[%s1 + $0x34] sm:$0xf]
      %v266 = vld [vmem:[%s1 + $0x38] sm:$0xf]
      %v267 = vld [vmem:[%s1 + $0x3c] sm:$0xf]
      %v268 = vld [vmem:[%s1 + $0x40] sm:$0xf]
      %v269 = vld [vmem:[%s1 + $0x44] sm:$0xf]
      %v270 = vld [vmem:[%s1 + $0x48] sm:$0xf]
      %v271 = vld [vmem:[%s1 + $0x4c] sm:$0xf]
      %v272 = vld [vmem:[%s1 + $0x50] sm:$0xf]
      %v273 = vld [vmem:[%s1 + $0x54] sm:$0xf]
      %v274 = vld [vmem:[%s1 + $0x58] sm:$0xf]
      %v275 = vld [vmem:[%s1 + $0x5c] sm:$0xf]
      %v276 = vld [vmem:[%s1 + $0x60] sm:$0xf]
      %v277 = vld [vmem:[%s1 + $0x64] sm:$0xf]
      %v278 = vld [vmem:[%s1 + $0x68] sm:$0xf]
      %v279 = vld [vmem:[%s1 + $0x6c] sm:$0xf]
      %v280 = vld [vmem:[%s1 + $0x70] sm:$0xf]
      %v281 = vld [vmem:[%s1 + $0x74] sm:$0xf]
      %v282 = vld [vmem:[%s1 + $0x78] sm:$0xf]
      %v283 = vld [vmem:[%s1 + $0x7c] sm:$0xf]
      %v285 = vunpack.c.l.b16 %v251
      %v286 = vunpack.c.h.b16 %v251
      %v287 = vpack.c.b16 %v285, %v285
      %v288 = vpack.c.b16 %v286, %v286
      %v323 = vunpack.c.l.b16 %v252
      %v324 = vunpack.c.l.b16 %v253
      %v325 = vunpack.c.l.b16 %v254
      %v326 = vunpack.c.l.b16 %v255
      %v327 = vunpack.c.l.b16 %v256
      %v328 = vunpack.c.l.b16 %v257
      %v329 = vunpack.c.l.b16 %v258
      %v330 = vunpack.c.l.b16 %v259
      %v331 = vunpack.c.l.b16 %v260
      %v332 = vunpack.c.l.b16 %v261
      %v333 = vunpack.c.l.b16 %v262
      %v334 = vunpack.c.l.b16 %v263
      %v335 = vunpack.c.l.b16 %v264
      %v336 = vunpack.c.l.b16 %v265
      %v337 = vunpack.c.l.b16 %v266
      %v338 = vunpack.c.l.b16 %v267
      %v339 = vunpack.c.l.b16 %v268
      %v340 = vunpack.c.l.b16 %v269
      %v341 = vunpack.c.l.b16 %v270
      %v342 = vunpack.c.l.b16 %v271
      %v343 = vunpack.c.l.b16 %v272
      %v344 = vunpack.c.l.b16 %v273
      %v345 = vunpack.c.l.b16 %v274
      %v346 = vunpack.c.l.b16 %v275
      %v347 = vunpack.c.l.b16 %v276
      %v348 = vunpack.c.l.b16 %v277
      %v349 = vunpack.c.l.b16 %v278
      %v350 = vunpack.c.l.b16 %v279
      %v351 = vunpack.c.l.b16 %v280
      %v352 = vunpack.c.l.b16 %v281
      %v353 = vunpack.c.l.b16 %v282
      %v354 = vunpack.c.l.b16 %v283
      %v355 = vpack.c.b16 %v324, %v323
      %v356 = vpack.c.b16 %v326, %v325
      %v357 = vpack.c.b16 %v328, %v327
      %v358 = vpack.c.b16 %v330, %v329
      %v359 = vpack.c.b16 %v332, %v331
      %v360 = vpack.c.b16 %v334, %v333
      %v361 = vpack.c.b16 %v336, %v335
      %v362 = vpack.c.b16 %v338, %v337
      %v363 = vpack.c.b16 %v340, %v339
      %v364 = vpack.c.b16 %v342, %v341
      %v365 = vpack.c.b16 %v344, %v343
      %v366 = vpack.c.b16 %v346, %v345
      %v367 = vpack.c.b16 %v348, %v347
      %v368 = vpack.c.b16 %v350, %v349
      %v369 = vpack.c.b16 %v352, %v351
      %v370 = vpack.c.b16 %v354, %v353
      %387 = vmatprep.subr.bf16.mxu0 0
      %388 = vmatpush1.bf16.msra.mxu0 %v355
      %389 = vmatprep.subr.bf16.mxu0 0
      %390 = vmatpush1.bf16.msra.mxu0 %v356
      %391 = vmatprep.subr.bf16.mxu0 0
      %392 = vmatpush1.bf16.msra.mxu0 %v357
      %393 = vmatprep.subr.bf16.mxu0 0
      %394 = vmatpush1.bf16.msra.mxu0 %v358
      %395 = vmatprep.subr.bf16.mxu0 0
      %396 = vmatpush1.bf16.msra.mxu0 %v359
      %397 = vmatprep.subr.bf16.mxu0 0
      %398 = vmatpush1.bf16.msra.mxu0 %v360
      %399 = vmatprep.subr.bf16.mxu0 0
      %400 = vmatpush1.bf16.msra.mxu0 %v361
      %401 = vmatprep.subr.bf16.mxu0 0
      %402 = vmatpush1.bf16.msra.mxu0 %v362
      %403 = vmatprep.subr.bf16.mxu0 0
      %404 = vmatpush1.bf16.msra.mxu0 %v363
      %405 = vmatprep.subr.bf16.mxu0 0
      %406 = vmatpush1.bf16.msra.mxu0 %v364
      %407 = vmatprep.subr.bf16.mxu0 0
      %408 = vmatpush1.bf16.msra.mxu0 %v365
      %409 = vmatprep.subr.bf16.mxu0 0
      %410 = vmatpush1.bf16.msra.mxu0 %v366
      %411 = vmatprep.subr.bf16.mxu0 0
      %412 = vmatpush1.bf16.msra.mxu0 %v367
      %413 = vmatprep.subr.bf16.mxu0 0
      %414 = vmatpush1.bf16.msra.mxu0 %v368
      %415 = vmatprep.subr.bf16.mxu0 0
      %416 = vmatpush1.bf16.msra.mxu0 %v369
      %417 = vmatprep.subr.bf16.mxu0 0
      %418 = vmatpush1.bf16.msra.mxu0 %v370
      %419 = vmatprep.mubr.bf16.mxu0 %v288
      %420 = vmatmul.mubr.bf16.gmra.mrb[0].mxu0 %v287
      %v421 = vpop.f32.mrb[0].mxu0
      %v422 = vadd.f32 0.0, %v421
      %v423 = vpop.f32.mrb[0].mxu0
      %v424 = vpop.f32.mrb[0].mxu0
      %v425 = vpop.f32.mrb[0].mxu0
      %426 = vdwg.mxu0
      %v427 = vlaneseq
      %v428 = vshrl.u32 %v427, 7
      %v429 = vld [vmem:[%s2] sm:$0x1]
      %v431 = vlaneseq
      %v432 = vshrl.u32 %v431, 7
      %v433 = vsub.s32 0, %v432
      %v434 = vrot.slane %v429, %v433
      %vm436 = vcmp.eq.s32.totalorder %v428, 0
      %v437 = vsel %vm436, %v434, %v422
      %v438 = vld [vmem:[%s3] sm:$0xff]
      %v439 = vadd.f32 %v437, %v438
      %v440 = vld [vmem:[%s4] sm:$0x1]
      %v441 = vld [vmem:[%s5] sm:$0x1]
      %vm442 = vcmask 261120
      %v443 = vsel %vm442, %v439, 0.0
      %444 = vadd.xlane.f32.xlu0 %v443
      %v445 = vpop.xlane.xlu0 %444
      %v446 = vrcp.pop 32.0
      %v447 = vmul.f32 %v445, %v446
      %v448 = vsub.f32 %v439, %v447
      %v449 = vmul.f32 %v448, %v448
      %v450 = vsel %vm442, %v449, 0.0
      %451 = vadd.xlane.f32.xlu0 %v450
      %v452 = vpop.xlane.xlu0 %451
      %v453 = vmul.f32 %v452, %v446
      %v454 = vadd.f32 %v453, 1e-05
      %v455 = vrsqrt.pop %v454
      %v456 = vmul.f32 %v448, %v455
      %v458 = vlaneseq
      %v459 = vshrl.u32 %v458, 7
      %v460 = vsub.s32 0, %v459
      %v461 = vrot.slane %v440, %v460
      %v463 = vmul.f32 %v456, %v461
      %v465 = vlaneseq
      %v466 = vshrl.u32 %v465, 7
      %v467 = vsub.s32 0, %v466
      %v468 = vrot.slane %v441, %v467
      %v470 = vadd.f32 %v463, %v468
      %v471 = vpack.c.bf16 %v470, %v470
      %vm472 = vcmask 257024
      %473 = vst.msk [vmem:[%s249] sm:$0xf] %vm472, %v471
      %p474 = scmp.lt.s32.totalorder %s17, 1
      %s475 = scalar_select %p474, %s17, 1
      %s476 = smul.addr %s475, 4
      %s477 = scalar_lea.vmem %s6, %s476
      // Predicated region
      $region45: #{vision_transformer_forward.4} parent=43 // pred_check
        %p478 = pneg %p166
      $region46: #{vision_transformer_forward.4} parent=43 // pred_check_branch
        %480 = sbr.rel (%p478) target = $region48
      $region47: #{vision_transformer_forward.4} parent=43 // pred_region
        _
      $region48: #{vision_transformer_forward.4} parent=43 // pred_fallthru
        _
    $region44: #{vision_transformer_forward.4} parent=5 // pred_fallthru
      _
    %p481 = scmp.le.s32.totalorder 2, %s12
    // Predicated region
    $region49: #{vision_transformer_forward.4} parent=5 // pred_check
      %p482 = pneg %p481
    $region50: #{vision_transformer_forward.4} parent=5 // pred_check_branch
      %484 = sbr.rel (%p482) target = $region52
    $region51: #{vision_transformer_forward.4} parent=5 // pred_region
      %s485 = ssub.s32 %s12, 2
      // Predicated region
      $region53: #{vision_transformer_forward.4} parent=51 // pred_check
        %p486 = pneg %p172
      $region54: #{vision_transformer_forward.4} parent=51 // pred_check_branch
        %488 = sbr.rel (%p486) target = $region56
      $region55: #{vision_transformer_forward.4} parent=51 // pred_region
        %p489 = scmp.lt.s32.totalorder %s18, 1
        %s490 = scalar_select %p489, %s18, 1
        %s491 = smul.addr %s490, 4
        %s492 = scalar_lea.vmem %s6, %s491
      $region56: #{vision_transformer_forward.4} parent=51 // pred_fallthru
        _
    $region52: #{vision_transformer_forward.4} parent=5 // pred_fallthru
      _
  $region6: #{vision_transformer_forward.4} parent=0 // loop_footer
    %s16 = sadd.s32 1, %s12
  $region7: #{vision_transformer_forward.4} parent=0 // loop_footer_branch
    %11 = sbr.rel target = $region3
  $region8: #{vision_transformer_forward.4} parent=0 // loop_exit
    _

// kernel: vision_transformer_forward.5
$region0: #{vision_transformer_forward.5}
  #allocation0 [shape = 'u32[]', space=smem, size = 0x4, offset = 0x4, fixed_abs, tag = 'smem constant byte address 0x4 - core index']
  #allocation1 [shape = 'u32[144,128]{1,0:T(1,128)}', space=vmem, size = 0x12000, scoped, tag = 'internal scratch']
  #allocation2 [shape = 'bf16[8,32]{1,0:T(8,128)(2,1)}', space=vmem, size = 0x800, scoped, tag = 'scratch operand']
  #allocation3 [shape = 'bf16[8,32]{1,0:T(8,128)(2,1)}', space=vmem, size = 0x800, scoped, tag = 'scratch operand']
  #allocation4 [shape = 'bf16[8,32]{1,0:T(8,128)(2,1)}', space=vmem, size = 0x800, scoped, tag = 'scratch operand']
  %s0 = inlined_call_operand.vmem [shape: bf16[2,8,32], index: 0, kind: input, shape index: {}, may-alias: {0,13}]
  %s1 = inlined_call_operand.vmem [shape: f32[1,32], index: 1, kind: input, shape index: {}]
  %s2 = inlined_call_operand.vmem [shape: f32[1,32], index: 2, kind: input, shape index: {}]
  %s3 = inlined_call_operand.vmem [shape: bf16[32,96], index: 3, kind: input, shape index: {}]
  %s4 = inlined_call_operand.vmem [shape: f32[1,96], index: 4, kind: input, shape index: {}]
  %s5 = inlined_call_operand.vmem [shape: bf16[32,32], index: 5, kind: input, shape index: {}]
  %s6 = inlined_call_operand.vmem [shape: f32[1,32], index: 6, kind: input, shape index: {}]
  %s7 = inlined_call_operand.vmem [shape: f32[1,32], index: 7, kind: input, shape index: {}]
  %s8 = inlined_call_operand.vmem [shape: f32[1,32], index: 8, kind: input, shape index: {}]
  %s9 = inlined_call_operand.vmem [shape: bf16[32,128], index: 9, kind: input, shape index: {}]
  %s10 = inlined_call_operand.vmem [shape: f32[1,128], index: 10, kind: input, shape index: {}]
  %s11 = inlined_call_operand.vmem [shape: bf16[128,32], index: 11, kind: input, shape index: {}]
  %s12 = inlined_call_operand.vmem [shape: f32[1,32], index: 12, kind: input, shape index: {}]
  %s13 = inlined_call_operand.vmem [shape: bf16[2,8,32], index: 13, kind: output, shape index: {}, may-alias: {0,13}]
  %s14 = sld [smem:[#allocation0]]
  $region85: #{vision_transformer_forward.5} parent=0
    _
  %s16 = ssub.s32 1, %s14
  %s17 = scalar_select 0, %s16, %s14
  loop: start=0, step=1, limit=4
  $region2: #{vision_transformer_forward.5} parent=0 // loop_pre_header
    _
  $region3: #{vision_transformer_forward.5} parent=0 // loop_header
    %s19 = sphi 0, %s23
    %p20 = scmp.ge.s32.totalorder %s19, 4
    %s26 = sphi 0, %s38
    %s27 = sphi 0, %s34
    %s28 = sphi 0, %s26
    %s29 = sphi 0, %s27
    %s30 = sphi 0, %s28
    %s31 = sphi 0, %s29
    %s41 = sphi 0, %s43
    %s44 = sphi 0, %s41
    %s45 = sphi 0, %s44
    %s61 = sphi 0, %s45
    %s65 = sphi 0, %s65
    %s67 = sphi 0, %s65
    %s68 = sphi 0, %s67
    %s82 = sphi 0, %s68
    %s86 = sphi 0, %s86
    %s88 = sphi 0, %s86
    %s89 = sphi 0, %s88
    %s103 = sphi 0, %s89
    %s107 = sphi 0, %s107
    %s109 = sphi 0, %s107
    %s110 = sphi 0, %s109
    %s124 = sphi 0, %s110
    %s128 = sphi 0, %s128
    %s130 = sphi 0, %s128
    %s131 = sphi 0, %s130
    %s145 = sphi 0, %s131
    %s149 = sphi 0, %s149
    %s151 = sphi 0, %s149
    %s152 = sphi 0, %s151
    %s166 = sphi 0, %s152
    %s170 = sphi 0, %s170
    %s172 = sphi 0, %s170
    %s173 = sphi 0, %s172
    %s187 = sphi 0, %s173
    %s191 = sphi 0, %s191
    %s193 = sphi 0, %s191
    %s194 = sphi 0, %s193
    %s208 = sphi 0, %s194
    %s212 = sphi 0, %s212
    %s214 = sphi 0, %s212
    %s215 = sphi 0, %s214
    %s229 = sphi 0, %s215
    %s233 = sphi 0, %s233
    %s235 = sphi 0, %s233
    %s236 = sphi 0, %s235
    %s250 = sphi 0, %s236
    %s254 = sphi 0, %s254
    %s256 = sphi 0, %s254
    %s257 = sphi 0, %s256
    %s271 = sphi 0, %s257
    %s275 = sphi 0, %s275
    %s277 = sphi 0, %s275
    %s278 = sphi 0, %s277
    %s292 = sphi 0, %s278
    %s296 = sphi 0, %s296
    %s298 = sphi 0, %s296
    %s299 = sphi 0, %s298
    %s313 = sphi 0, %s299
    %s321 = sphi 0, %s323
    %s324 = sphi 0, %s321
    %s325 = sphi 0, %s324
    %s341 = sphi 0, %s325
  $region4: #{vision_transformer_forward.5} parent=0 // loop_header_branch
    %22 = sbr.rel (%p20) target = $region8
  $region5: #{vision_transformer_forward.5} parent=0 // loop_body
    %s24 = ssub.s32 %s19, 1
    %s25 = ssub.s32 %s19, 2
    %s32 = sadd.s32 1, %s27
    %p33 = scmp.ge.s32.totalorder %s32, 1
    %s34 = scalar_select %p33, 0, %s32
    %s35 = sadd.s32 1, %s26
    %s36 = scalar_select %p33, %s35, %s26
    %p37 = scmp.ge.s32.totalorder %s36, 2
    %s38 = scalar_select %p37, 0, %s36
    %s39 = ssub.s32 %s26, %s38
    %p40 = scmp.eq.s32.totalorder %s39, 0
    %s42 = sadd.s32 %s41, 1
    %s43 = scalar_select %p40, %s41, %s42
    %p46 = pneg %p40
    %p47 = scmp.eq.s32.totalorder %s19, 1
    %p48 = por %p46, %p47
    %p49 = scmp.ne.s32.totalorder %s41, %s44
    %p50 = scmp.eq.s32.totalorder %s19, 0
    %p51 = por %p49, %p50
    %p52 = scmp.ne.s32.totalorder %s41, %s44
    %p53 = scmp.eq.s32.totalorder %s24, 1
    %p54 = por %p52, %p53
    %p55 = scmp.ne.s32.totalorder %s44, %s45
    %p56 = scmp.eq.s32.totalorder %s24, 0
    %p57 = por %p55, %p56
    %p58 = scmp.ne.s32.totalorder %s44, %s45
    %p59 = scmp.eq.s32.totalorder %s25, 1
    %p60 = por %p58, %p59
    %p62 = scmp.ne.s32.totalorder %s45, %s61
    %p63 = scmp.eq.s32.totalorder %s25, 0
    %p64 = por %p62, %p63
    %s66 = sadd.s32 %s65, 1
    %p69 = scmp.eq.s32.totalorder %s19, 1
    %p70 = scmp.ne.s32.totalorder %s65, %s67
    %p71 = scmp.eq.s32.totalorder %s19, 0
    %p72 = por %p70, %p71
    %p73 = scmp.ne.s32.totalorder %s65, %s67
    %p74 = scmp.eq.s32.totalorder %s24, 1
    %p75 = por %p73, %p74
    %p76 = scmp.ne.s32.totalorder %s67, %s68
    %p77 = scmp.eq.s32.totalorder %s24, 0
    %p78 = por %p76, %p77
    %p79 = scmp.ne.s32.totalorder %s67, %s68
    %p80 = scmp.eq.s32.totalorder %s25, 1
    %p81 = por %p79, %p80
    %p83 = scmp.ne.s32.totalorder %s68, %s82
    %p84 = scmp.eq.s32.totalorder %s25, 0
    %p85 = por %p83, %p84
    %s87 = sadd.s32 %s86, 1
    %p90 = scmp.eq.s32.totalorder %s19, 1
    %p91 = scmp.ne.s32.totalorder %s86, %s88
    %p92 = scmp.eq.s32.totalorder %s19, 0
    %p93 = por %p91, %p92
    %p94 = scmp.ne.s32.totalorder %s86, %s88
    %p95 = scmp.eq.s32.totalorder %s24, 1
    %p96 = por %p94, %p95
    %p97 = scmp.ne.s32.totalorder %s88, %s89
    %p98 = scmp.eq.s32.totalorder %s24, 0
    %p99 = por %p97, %p98
    %p100 = scmp.ne.s32.totalorder %s88, %s89
    %p101 = scmp.eq.s32.totalorder %s25, 1
    %p102 = por %p100, %p101
    %p104 = scmp.ne.s32.totalorder %s89, %s103
    %p105 = scmp.eq.s32.totalorder %s25, 0
    %p106 = por %p104, %p105
    %s108 = sadd.s32 %s107, 1
    %p111 = scmp.eq.s32.totalorder %s19, 1
    %p112 = scmp.ne.s32.totalorder %s107, %s109
    %p113 = scmp.eq.s32.totalorder %s19, 0
    %p114 = por %p112, %p113
    %p115 = scmp.ne.s32.totalorder %s107, %s109
    %p116 = scmp.eq.s32.totalorder %s24, 1
    %p117 = por %p115, %p116
    %p118 = scmp.ne.s32.totalorder %s109, %s110
    %p119 = scmp.eq.s32.totalorder %s24, 0
    %p120 = por %p118, %p119
    %p121 = scmp.ne.s32.totalorder %s109, %s110
    %p122 = scmp.eq.s32.totalorder %s25, 1
    %p123 = por %p121, %p122
    %p125 = scmp.ne.s32.totalorder %s110, %s124
    %p126 = scmp.eq.s32.totalorder %s25, 0
    %p127 = por %p125, %p126
    %s129 = sadd.s32 %s128, 1
    %p132 = scmp.eq.s32.totalorder %s19, 1
    %p133 = scmp.ne.s32.totalorder %s128, %s130
    %p134 = scmp.eq.s32.totalorder %s19, 0
    %p135 = por %p133, %p134
    %p136 = scmp.ne.s32.totalorder %s128, %s130
    %p137 = scmp.eq.s32.totalorder %s24, 1
    %p138 = por %p136, %p137
    %p139 = scmp.ne.s32.totalorder %s130, %s131
    %p140 = scmp.eq.s32.totalorder %s24, 0
    %p141 = por %p139, %p140
    %p142 = scmp.ne.s32.totalorder %s130, %s131
    %p143 = scmp.eq.s32.totalorder %s25, 1
    %p144 = por %p142, %p143
    %p146 = scmp.ne.s32.totalorder %s131, %s145
    %p147 = scmp.eq.s32.totalorder %s25, 0
    %p148 = por %p146, %p147
    %s150 = sadd.s32 %s149, 1
    %p153 = scmp.eq.s32.totalorder %s19, 1
    %p154 = scmp.ne.s32.totalorder %s149, %s151
    %p155 = scmp.eq.s32.totalorder %s19, 0
    %p156 = por %p154, %p155
    %p157 = scmp.ne.s32.totalorder %s149, %s151
    %p158 = scmp.eq.s32.totalorder %s24, 1
    %p159 = por %p157, %p158
    %p160 = scmp.ne.s32.totalorder %s151, %s152
    %p161 = scmp.eq.s32.totalorder %s24, 0
    %p162 = por %p160, %p161
    %p163 = scmp.ne.s32.totalorder %s151, %s152
    %p164 = scmp.eq.s32.totalorder %s25, 1
    %p165 = por %p163, %p164
    %p167 = scmp.ne.s32.totalorder %s152, %s166
    %p168 = scmp.eq.s32.totalorder %s25, 0
    %p169 = por %p167, %p168
    %s171 = sadd.s32 %s170, 1
    %p174 = scmp.eq.s32.totalorder %s19, 1
    %p175 = scmp.ne.s32.totalorder %s170, %s172
    %p176 = scmp.eq.s32.totalorder %s19, 0
    %p177 = por %p175, %p176
    %p178 = scmp.ne.s32.totalorder %s170, %s172
    %p179 = scmp.eq.s32.totalorder %s24, 1
    %p180 = por %p178, %p179
    %p181 = scmp.ne.s32.totalorder %s172, %s173
    %p182 = scmp.eq.s32.totalorder %s24, 0
    %p183 = por %p181, %p182
    %p184 = scmp.ne.s32.totalorder %s172, %s173
    %p185 = scmp.eq.s32.totalorder %s25, 1
    %p186 = por %p184, %p185
    %p188 = scmp.ne.s32.totalorder %s173, %s187
    %p189 = scmp.eq.s32.totalorder %s25, 0
    %p190 = por %p188, %p189
    %s192 = sadd.s32 %s191, 1
    %p195 = scmp.eq.s32.totalorder %s19, 1
    %p196 = scmp.ne.s32.totalorder %s191, %s193
    %p197 = scmp.eq.s32.totalorder %s19, 0
    %p198 = por %p196, %p197
    %p199 = scmp.ne.s32.totalorder %s191, %s193
    %p200 = scmp.eq.s32.totalorder %s24, 1
    %p201 = por %p199, %p200
    %p202 = scmp.ne.s32.totalorder %s193, %s194
    %p203 = scmp.eq.s32.totalorder %s24, 0
    %p204 = por %p202, %p203
    %p205 = scmp.ne.s32.totalorder %s193, %s194
    %p206 = scmp.eq.s32.totalorder %s25, 1
    %p207 = por %p205, %p206
    %p209 = scmp.ne.s32.totalorder %s194, %s208
    %p210 = scmp.eq.s32.totalorder %s25, 0
    %p211 = por %p209, %p210
    %s213 = sadd.s32 %s212, 1
    %p216 = scmp.eq.s32.totalorder %s19, 1
    %p217 = scmp.ne.s32.totalorder %s212, %s214
    %p218 = scmp.eq.s32.totalorder %s19, 0
    %p219 = por %p217, %p218
    %p220 = scmp.ne.s32.totalorder %s212, %s214
    %p221 = scmp.eq.s32.totalorder %s24, 1
    %p222 = por %p220, %p221
    %p223 = scmp.ne.s32.totalorder %s214, %s215
    %p224 = scmp.eq.s32.totalorder %s24, 0
    %p225 = por %p223, %p224
    %p226 = scmp.ne.s32.totalorder %s214, %s215
    %p227 = scmp.eq.s32.totalorder %s25, 1
    %p228 = por %p226, %p227
    %p230 = scmp.ne.s32.totalorder %s215, %s229
    %p231 = scmp.eq.s32.totalorder %s25, 0
    %p232 = por %p230, %p231
    %s234 = sadd.s32 %s233, 1
    %p237 = scmp.eq.s32.totalorder %s19, 1
    %p238 = scmp.ne.s32.totalorder %s233, %s235
    %p239 = scmp.eq.s32.totalorder %s19, 0
    %p240 = por %p238, %p239
    %p241 = scmp.ne.s32.totalorder %s233, %s235
    %p242 = scmp.eq.s32.totalorder %s24, 1
    %p243 = por %p241, %p242
    %p244 = scmp.ne.s32.totalorder %s235, %s236
    %p245 = scmp.eq.s32.totalorder %s24, 0
    %p246 = por %p244, %p245
    %p247 = scmp.ne.s32.totalorder %s235, %s236
    %p248 = scmp.eq.s32.totalorder %s25, 1
    %p249 = por %p247, %p248
    %p251 = scmp.ne.s32.totalorder %s236, %s250
    %p252 = scmp.eq.s32.totalorder %s25, 0
    %p253 = por %p251, %p252
    %s255 = sadd.s32 %s254, 1
    %p258 = scmp.eq.s32.totalorder %s19, 1
    %p259 = scmp.ne.s32.totalorder %s254, %s256
    %p260 = scmp.eq.s32.totalorder %s19, 0
    %p261 = por %p259, %p260
    %p262 = scmp.ne.s32.totalorder %s254, %s256
    %p263 = scmp.eq.s32.totalorder %s24, 1
    %p264 = por %p262, %p263
    %p265 = scmp.ne.s32.totalorder %s256, %s257
    %p266 = scmp.eq.s32.totalorder %s24, 0
    %p267 = por %p265, %p266
    %p268 = scmp.ne.s32.totalorder %s256, %s257
    %p269 = scmp.eq.s32.totalorder %s25, 1
    %p270 = por %p268, %p269
    %p272 = scmp.ne.s32.totalorder %s257, %s271
    %p273 = scmp.eq.s32.totalorder %s25, 0
    %p274 = por %p272, %p273
    %s276 = sadd.s32 %s275, 1
    %p279 = scmp.eq.s32.totalorder %s19, 1
    %p280 = scmp.ne.s32.totalorder %s275, %s277
    %p281 = scmp.eq.s32.totalorder %s19, 0
    %p282 = por %p280, %p281
    %p283 = scmp.ne.s32.totalorder %s275, %s277
    %p284 = scmp.eq.s32.totalorder %s24, 1
    %p285 = por %p283, %p284
    %p286 = scmp.ne.s32.totalorder %s277, %s278
    %p287 = scmp.eq.s32.totalorder %s24, 0
    %p288 = por %p286, %p287
    %p289 = scmp.ne.s32.totalorder %s277, %s278
    %p290 = scmp.eq.s32.totalorder %s25, 1
    %p291 = por %p289, %p290
    %p293 = scmp.ne.s32.totalorder %s278, %s292
    %p294 = scmp.eq.s32.totalorder %s25, 0
    %p295 = por %p293, %p294
    %s297 = sadd.s32 %s296, 1
    %p300 = scmp.eq.s32.totalorder %s19, 1
    %p301 = scmp.ne.s32.totalorder %s296, %s298
    %p302 = scmp.eq.s32.totalorder %s19, 0
    %p303 = por %p301, %p302
    %p304 = scmp.ne.s32.totalorder %s296, %s298
    %p305 = scmp.eq.s32.totalorder %s24, 1
    %p306 = por %p304, %p305
    %p307 = scmp.ne.s32.totalorder %s298, %s299
    %p308 = scmp.eq.s32.totalorder %s24, 0
    %p309 = por %p307, %p308
    %p310 = scmp.ne.s32.totalorder %s298, %s299
    %p311 = scmp.eq.s32.totalorder %s25, 1
    %p312 = por %p310, %p311
    %p314 = scmp.ne.s32.totalorder %s299, %s313
    %p315 = scmp.eq.s32.totalorder %s25, 0
    %p316 = por %p314, %p315
    %s317 = ssub.s32 %s26, %s38
    %s318 = ssub.s32 %s27, %s34
    %s319 = sor.u32 %s317, %s318
    %p320 = scmp.eq.s32.totalorder %s319, 0
    %s322 = sadd.s32 %s321, 1
    %s323 = scalar_select %p320, %s321, %s322
    %p326 = pneg %p320
    %p327 = scmp.eq.s32.totalorder %s19, 1
    %p328 = por %p326, %p327
    %p329 = scmp.ne.s32.totalorder %s321, %s324
    %p330 = scmp.eq.s32.totalorder %s19, 0
    %p331 = por %p329, %p330
    %p332 = scmp.ne.s32.totalorder %s321, %s324
    %p333 = scmp.eq.s32.totalorder %s24, 1
    %p334 = por %p332, %p333
    %p335 = scmp.ne.s32.totalorder %s324, %s325
    %p336 = scmp.eq.s32.totalorder %s24, 0
    %p337 = por %p335, %p336
    %p338 = scmp.ne.s32.totalorder %s324, %s325
    %p339 = scmp.eq.s32.totalorder %s25, 1
    %p340 = por %p338, %p339
    %p342 = scmp.ne.s32.totalorder %s325, %s341
    %p343 = scmp.eq.s32.totalorder %s25, 0
    %p344 = por %p342, %p343
    %p345 = scmp.le.s32.totalorder 1, %s19
    %p346 = scmp.lt.s32.totalorder %s19, 3
    %p347 = pnand %p345, %p346
    %p348 = pneg %p347
    // Predicated region
    $region9: #{vision_transformer_forward.5} parent=5 // pred_check
      _
    $region10: #{vision_transformer_forward.5} parent=5 // pred_check_branch
      %350 = sbr.rel (%p347) target = $region12
    $region11: #{vision_transformer_forward.5} parent=5 // pred_region
      %s351 = ssub.s32 %s19, 1
      // Predicated region
      $region13: #{vision_transformer_forward.5} parent=11 // pred_check
        %p352 = pneg %p78
      $region14: #{vision_transformer_forward.5} parent=11 // pred_check_branch
        %354 = sbr.rel (%p352) target = $region16
      $region15: #{vision_transformer_forward.5} parent=11 // pred_region
        _
      $region16: #{vision_transformer_forward.5} parent=11 // pred_fallthru
        _
      // Predicated region
      $region17: #{vision_transformer_forward.5} parent=11 // pred_check
        %p355 = pneg %p99
      $region18: #{vision_transformer_forward.5} parent=11 // pred_check_branch
        %357 = sbr.rel (%p355) target = $region20
      $region19: #{vision_transformer_forward.5} parent=11 // pred_region
        _
      $region20: #{vision_transformer_forward.5} parent=11 // pred_fallthru
        _
      // Predicated region
      $region21: #{vision_transformer_forward.5} parent=11 // pred_check
        %p358 = pneg %p120
      $region22: #{vision_transformer_forward.5} parent=11 // pred_check_branch
        %360 = sbr.rel (%p358) target = $region24
      $region23: #{vision_transformer_forward.5} parent=11 // pred_region
        _
      $region24: #{vision_transformer_forward.5} parent=11 // pred_fallthru
        _
      // Predicated region
      $region25: #{vision_transformer_forward.5} parent=11 // pred_check
        %p361 = pneg %p141
      $region26: #{vision_transformer_forward.5} parent=11 // pred_check_branch
        %363 = sbr.rel (%p361) target = $region28
      $region27: #{vision_transformer_forward.5} parent=11 // pred_region
        _
      $region28: #{vision_transformer_forward.5} parent=11 // pred_fallthru
        _
      // Predicated region
      $region29: #{vision_transformer_forward.5} parent=11 // pred_check
        %p364 = pneg %p162
      $region30: #{vision_transformer_forward.5} parent=11 // pred_check_branch
        %366 = sbr.rel (%p364) target = $region32
      $region31: #{vision_transformer_forward.5} parent=11 // pred_region
        _
      $region32: #{vision_transformer_forward.5} parent=11 // pred_fallthru
        _
      // Predicated region
      $region33: #{vision_transformer_forward.5} parent=11 // pred_check
        %p367 = pneg %p183
      $region34: #{vision_transformer_forward.5} parent=11 // pred_check_branch
        %369 = sbr.rel (%p367) target = $region36
      $region35: #{vision_transformer_forward.5} parent=11 // pred_region
        _
      $region36: #{vision_transformer_forward.5} parent=11 // pred_fallthru
        _
      // Predicated region
      $region37: #{vision_transformer_forward.5} parent=11 // pred_check
        %p370 = pneg %p204
      $region38: #{vision_transformer_forward.5} parent=11 // pred_check_branch
        %372 = sbr.rel (%p370) target = $region40
      $region39: #{vision_transformer_forward.5} parent=11 // pred_region
        _
      $region40: #{vision_transformer_forward.5} parent=11 // pred_fallthru
        _
      // Predicated region
      $region41: #{vision_transformer_forward.5} parent=11 // pred_check
        %p373 = pneg %p225
      $region42: #{vision_transformer_forward.5} parent=11 // pred_check_branch
        %375 = sbr.rel (%p373) target = $region44
      $region43: #{vision_transformer_forward.5} parent=11 // pred_region
        _
      $region44: #{vision_transformer_forward.5} parent=11 // pred_fallthru
        _
      // Predicated region
      $region45: #{vision_transformer_forward.5} parent=11 // pred_check
        %p376 = pneg %p246
      $region46: #{vision_transformer_forward.5} parent=11 // pred_check_branch
        %378 = sbr.rel (%p376) target = $region48
      $region47: #{vision_transformer_forward.5} parent=11 // pred_region
        _
      $region48: #{vision_transformer_forward.5} parent=11 // pred_fallthru
        _
      // Predicated region
      $region49: #{vision_transformer_forward.5} parent=11 // pred_check
        %p379 = pneg %p267
      $region50: #{vision_transformer_forward.5} parent=11 // pred_check_branch
        %381 = sbr.rel (%p379) target = $region52
      $region51: #{vision_transformer_forward.5} parent=11 // pred_region
        _
      $region52: #{vision_transformer_forward.5} parent=11 // pred_fallthru
        _
      // Predicated region
      $region53: #{vision_transformer_forward.5} parent=11 // pred_check
        %p382 = pneg %p288
      $region54: #{vision_transformer_forward.5} parent=11 // pred_check_branch
        %384 = sbr.rel (%p382) target = $region56
      $region55: #{vision_transformer_forward.5} parent=11 // pred_region
        _
      $region56: #{vision_transformer_forward.5} parent=11 // pred_fallthru
        _
      // Predicated region
      $region57: #{vision_transformer_forward.5} parent=11 // pred_check
        %p385 = pneg %p309
      $region58: #{vision_transformer_forward.5} parent=11 // pred_check_branch
        %387 = sbr.rel (%p385) target = $region60
      $region59: #{vision_transformer_forward.5} parent=11 // pred_region
        _
      $region60: #{vision_transformer_forward.5} parent=11 // pred_fallthru
        _
    $region12: #{vision_transformer_forward.5} parent=5 // pred_fallthru
      _
    %p388 = scmp.lt.s32.totalorder %s19, 2
    // Predicated region
    $region61: #{vision_transformer_forward.5} parent=5 // pred_check
      %p389 = pneg %p388
    $region62: #{vision_transformer_forward.5} parent=5 // pred_check_branch
      %391 = sbr.rel (%p389) target = $region64
    $region63: #{vision_transformer_forward.5} parent=5 // pred_region
      // Predicated region
      $region65: #{vision_transformer_forward.5} parent=63 // pred_check
        %p392 = pneg %p51
      $region66: #{vision_transformer_forward.5} parent=63 // pred_check_branch
        %394 = sbr.rel (%p392) target = $region68
      $region67: #{vision_transformer_forward.5} parent=63 // pred_region
        %p395 = scmp.lt.s32.totalorder %s26, 1
        %s396 = scalar_select %p395, %s26, 1
        %s397 = smul.addr %s396, 4
        %s398 = scalar_lea.vmem %s0, %s397
      $region68: #{vision_transformer_forward.5} parent=63 // pred_fallthru
        _
    $region64: #{vision_transformer_forward.5} parent=5 // pred_fallthru
      _
    %p399 = scmp.le.s32.totalorder 1, %s19
    %p400 = scmp.lt.s32.totalorder %s19, 3
    %p401 = pnand %p399, %p400
    %p402 = pneg %p401
    // Predicated region
    $region69: #{vision_transformer_forward.5} parent=5 // pred_check
      _
    $region70: #{vision_transformer_forward.5} parent=5 // pred_check_branch
      %404 = sbr.rel (%p401) target = $region72
    $region71: #{vision_transformer_forward.5} parent=5 // pred_region
      %s405 = ssub.s32 %s19, 1
      %p406 = scmp.lt.s32.totalorder %s28, 1
      %s407 = scalar_select %p406, %s28, 1
      %s408 = smul.addr %s407, 4
      %s409 = scalar_lea.vmem %s0, %s408
      %p410 = pneg %p57
      %p411 = pneg %p54
      %p412 = pneg %p78
      %p413 = pneg %p75
      %p414 = pneg %p99
      %p415 = pneg %p96
      %p416 = pneg %p120
      %p417 = pneg %p117
      %p418 = pneg %p141
      %p419 = pneg %p138
      %p420 = pneg %p162
      %p421 = pneg %p159
      %p422 = pneg %p183
      %p423 = pneg %p180
      %p424 = pneg %p204
      %p425 = pneg %p201
      %p426 = pneg %p225
      %p427 = pneg %p222
      %p428 = pneg %p246
      %p429 = pneg %p243
      %p430 = pneg %p267
      %p431 = pneg %p264
      %p432 = pneg %p288
      %p433 = pneg %p285
      %p434 = pneg %p309
      %p435 = pneg %p306
      %p436 = pneg %p337
      %p437 = pneg %p334
      %p438 = scmp.lt.s32.totalorder %s28, 1
      %s439 = scalar_select %p438, %s28, 1
      %p440 = scmp.lt.s32.totalorder %s29, 0
      %s441 = scalar_select %p440, %s29, 0
      %s442 = sadd.s32 %s441, %s439
      %s443 = smul.addr %s442, 4
      %s444 = scalar_lea.vmem %s13, %s443
      %p445 = scmp.lt.s32.totalorder %s28, 1
      %s446 = scalar_select %p445, %s28, 1
      %s447 = smul.addr %s446, 4
      %s448 = scalar_lea.vmem %s0, %s447
      %p449 = scmp.lt.s32.totalorder %s28, 1
      %s450 = scalar_select %p449, %s28, 1
      %p451 = scmp.lt.s32.totalorder %s29, 0
      %s452 = scalar_select %p451, %s29, 0
      %s453 = sadd.s32 %s452, %s450
      %s454 = smul.addr %s453, 4
      %s455 = scalar_lea.vmem %s13, %s454
      %v457 = vld [vmem:[%s448] sm:$0xf]
      %v458 = vunpack.c.l.bf16 %v457
      %v459 = vld [vmem:[%s1] sm:$0x1]
      %v460 = vld [vmem:[%s2] sm:$0x1]
      %vm461 = vcmask 261120
      %v462 = vsel %vm461, %v458, 0.0
      %463 = vadd.xlane.f32.xlu0 %v462
      %v464 = vpop.xlane.xlu0 %463
      %v465 = vrcp.pop 32.0
      %v466 = vmul.f32 %v464, %v465
      %v467 = vsub.f32 %v458, %v466
      %v468 = vmul.f32 %v467, %v467
      %v469 = vsel %vm461, %v468, 0.0
      %470 = vadd.xlane.f32.xlu0 %v469
      %v471 = vpop.xlane.xlu0 %470
      %v472 = vmul.f32 %v471, %v465
      %v473 = vadd.f32 %v472, 1e-05
      %v474 = vrsqrt.pop %v473
      %v475 = vmul.f32 %v467, %v474
      %v477 = vlaneseq
      %v478 = vshrl.u32 %v477, 7
      %v479 = vsub.s32 0, %v478
      %v480 = vrot.slane %v459, %v479
      %v482 = vmul.f32 %v475, %v480
      %v484 = vlaneseq
      %v485 = vshrl.u32 %v484, 7
      %v486 = vsub.s32 0, %v485
      %v487 = vrot.slane %v460, %v486
      %v489 = vadd.f32 %v482, %v487
      %v490 = vpack.c.bf16 %v489, %v489
      %v491 = vld [vmem:[%s3] sm:$0xf]
      %v492 = vld [vmem:[%s3 + $0x4] sm:$0xf]
      %v493 = vld [vmem:[%s3 + $0x8] sm:$0xf]
      %v494 = vld [vmem:[%s3 + $0xc] sm:$0xf]
      %v495 = vld [vmem:[%s4] sm:$0x1]
      %v497 = vlaneseq
      %v498 = vshrl.u32 %v497, 7
      %v499 = vsub.s32 0, %v498
      %v500 = vrot.slane %v495, %v499
      %v506 = vunpack.c.l.b16 %v491
      %v507 = vunpack.c.l.b16 %v492
      %v508 = vunpack.c.l.b16 %v493
      %v509 = vunpack.c.l.b16 %v494
      %v510 = vpack.c.b16 %v507, %v506
      %v511 = vpack.c.b16 %v509, %v508
      %v515 = vsel %vm461, %v490, 0
      %517 = vmatprep.subr.bf16.mxu0 0
      %518 = vmatpush1.bf16.msra.mxu0 %v510
      %519 = vmatprep.subr.bf16.mxu0 0
      %520 = vmatpush1.bf16.msra.mxu0 %v511
      %521 = vmatprep.subr.bf16.mxu0 0
      %522 = vmatpush1.bf16.msra.mxu0 0
      %523 = vmatprep.subr.bf16.mxu0 0
      %524 = vmatpush1.bf16.msra.mxu0 0
      %525 = vmatprep.subr.bf16.mxu0 0
      %526 = vmatpush1.bf16.msra.mxu0 0
      %527 = vmatprep.subr.bf16.mxu0 0
      %528 = vmatpush1.bf16.msra.mxu0 0
      %529 = vmatprep.subr.bf16.mxu0 0
      %530 = vmatpush1.bf16.msra.mxu0 0
      %531 = vmatprep.subr.bf16.mxu0 0
      %532 = vmatpush1.bf16.msra.mxu0 0
      %533 = vmatprep.subr.bf16.mxu0 0
      %534 = vmatpush1.bf16.msra.mxu0 0
      %535 = vmatprep.subr.bf16.mxu0 0
      %536 = vmatpush1.bf16.msra.mxu0 0
      %537 = vmatprep.subr.bf16.mxu0 0
      %538 = vmatpush1.bf16.msra.mxu0 0
      %539 = vmatprep.subr.bf16.mxu0 0
      %540 = vmatpush1.bf16.msra.mxu0 0
      %541 = vmatprep.subr.bf16.mxu0 0
      %542 = vmatpush1.bf16.msra.mxu0 0
      %543 = vmatprep.subr.bf16.mxu0 0
      %544 = vmatpush1.bf16.msra.mxu0 0
      %545 = vmatprep.subr.bf16.mxu0 0
      %546 = vmatpush1.bf16.msra.mxu0 0
      %547 = vmatprep.subr.bf16.mxu0 0
      %548 = vmatpush1.bf16.msra.mxu0 0
      %549 = vmatprep.mubr.bf16.mxu0 0
      %550 = vmatmul.mubr.bf16.gmra.mrb[0].mxu0 %v515
      %v551 = vpop.f32.mrb[0].mxu0
      %v552 = vadd.f32 %v500, %v551
      %v553 = vpop.f32.mrb[0].mxu0
      %v554 = vpop.f32.mrb[0].mxu0
      %v555 = vpop.f32.mrb[0].mxu0
      %556 = vdwg.mxu0
      %v557 = vpack.c.bf16 %v552, %v552
      %v559 = vunpack.c.l.b16 %v557
      %v560 = vpack.c.b16 %v559, %v559
      %561 = vrot.lane.b32.xlu0 %v560, 96
      %v562 = vpop.permute.xlu0 %561
      %vm564 = vcmask 257024
      %565 = vst.msk [vmem:[#allocation2] sm:$0xf] %vm564, %v562
      %566 = vrot.lane.b32.xlu0 %v560, 64
      %v567 = vpop.permute.xlu0 %566
      %569 = vst.msk [vmem:[#allocation3] sm:$0xf] %vm564, %v567
      %v570 = vlaneseq
      %v571 = vand.u32 %v570, 127
      %vm572 = vcmp.lt.s32.totalorder %v571, 5
      %v573 = vmul.f32 %v552, 0.35355338
      %v574 = vpack.c.bf16 %v573, %v573
      %v575 = vld [vmem:[#allocation2] sm:$0xf]
      %v576 = vld [vmem:[#allocation3] sm:$0xf]
      %vm577 = vcmask 64512
      %v579 = vsel %vm577, %v574, 0
      %v582 = vsel %vm577, %v575, 0
      %584 = vmatprep.subr.bf16.mxu0 0
      %585 = vmatpush1.bf16.xpose.msra.mxu0 %v582
      %586 = vmatprep.subr.bf16.mxu0 0
      %587 = vmatpush1.bf16.xpose.msra.mxu0 0
      %588 = vmatprep.subr.bf16.mxu0 0
      %589 = vmatpush1.bf16.xpose.msra.mxu0 0
      %590 = vmatprep.subr.bf16.mxu0 0
      %591 = vmatpush1.bf16.xpose.msra.mxu0 0
      %592 = vmatprep.subr.bf16.mxu0 0
      %593 = vmatpush1.bf16.xpose.msra.mxu0 0
      %594 = vmatprep.subr.bf16.mxu0 0
      %595 = vmatpush1.bf16.xpose.msra.mxu0 0
      %596 = vmatprep.subr.bf16.mxu0 0
      %597 = vmatpush1.bf16.xpose.msra.mxu0 0
      %598 = vmatprep.subr.bf16.mxu0 0
      %599 = vmatpush1.bf16.xpose.msra.mxu0 0
      %600 = vmatprep.subr.bf16.mxu0 0
      %601 = vmatpush1.bf16.xpose.msra.mxu0 0
      %602 = vmatprep.subr.bf16.mxu0 0
      %603 = vmatpush1.bf16.xpose.msra.mxu0 0
      %604 = vmatprep.subr.bf16.mxu0 0
      %605 = vmatpush1.bf16.xpose.msra.mxu0 0
      %606 = vmatprep.subr.bf16.mxu0 0
      %607 = vmatpush1.bf16.xpose.msra.mxu0 0
      %608 = vmatprep.subr.bf16.mxu0 0
      %609 = vmatpush1.bf16.xpose.msra.mxu0 0
      %610 = vmatprep.subr.bf16.mxu0 0
      %611 = vmatpush1.bf16.xpose.msra.mxu0 0
      %612 = vmatprep.subr.bf16.mxu0 0
      %613 = vmatpush1.bf16.xpose.msra.mxu0 0
      %614 = vmatprep.subr.bf16.mxu0 0
      %615 = vmatpush1.bf16.xpose.msra.mxu0 0
      %616 = vmatprep.mubr.bf16.mxu0 0
      %617 = vmatmul.mubr.bf16.gmra.mrb[0].mxu0 %v579
      %v618 = vpop.f32.mrb[0].mxu0
      %v619 = vadd.f32 0.0, %v618
      %v620 = vpop.f32.mrb[0].mxu0
      %v621 = vpop.f32.mrb[0].mxu0
      %v622 = vpop.f32.mrb[0].mxu0
      %623 = vdwg.mxu0
      %v624 = vsel %vm572, %v619, -1e+30
      %v625 = vsel %vm577, %v624, -inf
      %626 = vmax.xlane.f32.xlu0 %v625
      %v627 = vpop.xlane.xlu0 %626
      %v628 = vsub.f32 %v624, %v627
      %v629 = vmul.f32 %v628, 1.442695
      %v630 = vpow.pop %v629
      %v631 = vsel %vm577, %v630, 0.0
      %632 = vadd.xlane.f32.xlu0 %v631
      %v633 = vpop.xlane.xlu0 %632
      %v634 = vrcp.pop %v633
      %v635 = vmul.f32 %v630, %v634
      %v636 = vpack.c.bf16 %v635, %v635
      %v638 = vsel %vm577, %v636, 0
      %vm640 = vcmask 1043456
      %v642 = vsel %vm640, %v576, 0
      %644 = vmatprep.subr.bf16.mxu0 0
      %645 = vmatpush1.bf16.msra.mxu0 %v642
      %646 = vmatprep.subr.bf16.mxu0 0
      %647 = vmatpush1.bf16.msra.mxu0 0
      %648 = vmatprep.subr.bf16.mxu0 0
      %649 = vmatpush1.bf16.msra.mxu0 0
      %650 = vmatprep.subr.bf16.mxu0 0
      %651 = vmatpush1.bf16.msra.mxu0 0
      %652 = vmatprep.subr.bf16.mxu0 0
      %653 = vmatpush1.bf16.msra.mxu0 0
      %654 = vmatprep.subr.bf16.mxu0 0
      %655 = vmatpush1.bf16.msra.mxu0 0
      %656 = vmatprep.subr.bf16.mxu0 0
      %657 = vmatpush1.bf16.msra.mxu0 0
      %658 = vmatprep.subr.bf16.mxu0 0
      %659 = vmatpush1.bf16.msra.mxu0 0
      %660 = vmatprep.subr.bf16.mxu0 0
      %661 = vmatpush1.bf16.msra.mxu0 0
      %662 = vmatprep.subr.bf16.mxu0 0
      %663 = vmatpush1.bf16.msra.mxu0 0
      %664 = vmatprep.subr.bf16.mxu0 0
      %665 = vmatpush1.bf16.msra.mxu0 0
      %666 = vmatprep.subr.bf16.mxu0 0
      %667 = vmatpush1.bf16.msra.mxu0 0
      %668 = vmatprep.subr.bf16.mxu0 0
      %669 = vmatpush1.bf16.msra.mxu0 0
      %670 = vmatprep.subr.bf16.mxu0 0
      %671 = vmatpush1.bf16.msra.mxu0 0
      %672 = vmatprep.subr.bf16.mxu0 0
      %673 = vmatpush1.bf16.msra.mxu0 0
      %674 = vmatprep.subr.bf16.mxu0 0
      %675 = vmatpush1.bf16.msra.mxu0 0
      %676 = vmatprep.mubr.bf16.mxu0 0
      %677 = vmatmul.mubr.bf16.gmra.mrb[0].mxu0 %v638
      %v678 = vpop.f32.mrb[0].mxu0
      %v679 = vadd.f32 0.0, %v678
      %v680 = vpop.f32.mrb[0].mxu0
      %v681 = vpop.f32.mrb[0].mxu0
      %v682 = vpop.f32.mrb[0].mxu0
      %683 = vdwg.mxu0
      %v684 = vpack.c.bf16 %v679, %v679
      %vm685 = vcmask 60416
      %686 = vst.msk [vmem:[#allocation4] sm:$0xf] %vm685, %v684
      %v687 = vld [vmem:[#allocation2] sm:$0xf]
      %v688 = vld [vmem:[#allocation3] sm:$0xf]
      %690 = vrot.lane.b32.xlu0 %v574, 120
      %v691 = vpop.permute.xlu0 %690
      %v693 = vunpack.c.l.b16 %v687
      %v694 = vpack.c.b16 %v693, %v693
      %695 = vrot.lane.b32.xlu0 %v694, 120
      %v696 = vpop.permute.xlu0 %695
      %v698 = vsel %vm577, %v691, 0
      %v701 = vsel %vm577, %v696, 0
      %703 = vmatprep.subr.bf16.mxu0 0
      %704 = vmatpush1.bf16.xpose.msra.mxu0 %v701
      %705 = vmatprep.subr.bf16.mxu0 0
      %706 = vmatpush1.bf16.xpose.msra.mxu0 0
      %707 = vmatprep.subr.bf16.mxu0 0
      %708 = vmatpush1.bf16.xpose.msra.mxu0 0
      %709 = vmatprep.subr.bf16.mxu0 0
      %710 = vmatpush1.bf16.xpose.msra.mxu0 0
      %711 = vmatprep.subr.bf16.mxu0 0
      %712 = vmatpush1.bf16.xpose.msra.mxu0 0
      %713 = vmatprep.subr.bf16.mxu0 0
      %714 = vmatpush1.bf16.xpose.msra.mxu0 0
      %715 = vmatprep.subr.bf16.mxu0 0
      %716 = vmatpush1.bf16.xpose.msra.mxu0 0
      %717 = vmatprep.subr.bf16.mxu0 0
      %718 = vmatpush1.bf16.xpose.msra.mxu0 0
      %719 = vmatprep.subr.bf16.mxu0 0
      %720 = vmatpush1.bf16.xpose.msra.mxu0 0
      %721 = vmatprep.subr.bf16.mxu0 0
      %722 = vmatpush1.bf16.xpose.msra.mxu0 0
      %723 = vmatprep.subr.bf16.mxu0 0
      %724 = vmatpush1.bf16.xpose.msra.mxu0 0
      %725 = vmatprep.subr.bf16.mxu0 0
      %726 = vmatpush1.bf16.xpose.msra.mxu0 0
      %727 = vmatprep.subr.bf16.mxu0 0
      %728 = vmatpush1.bf16.xpose.msra.mxu0 0
      %729 = vmatprep.subr.bf16.mxu0 0
      %730 = vmatpush1.bf16.xpose.msra.mxu0 0
      %731 = vmatprep.subr.bf16.mxu0 0
      %732 = vmatpush1.bf16.xpose.msra.mxu0 0
      %733 = vmatprep.subr.bf16.mxu0 0
      %734 = vmatpush1.bf16.xpose.msra.mxu0 0
      %735 = vmatprep.mubr.bf16.mxu0 0
      %736 = vmatmul.mubr.bf16.gmra.mrb[0].mxu0 %v698
      %v737 = vpop.f32.mrb[0].mxu0
      %v738 = vadd.f32 0.0, %v737
      %v739 = vpop.f32.mrb[0].mxu0
      %v740 = vpop.f32.mrb[0].mxu0
      %v741 = vpop.f32.mrb[0].mxu0
      %742 = vdwg.mxu0
      %v743 = vsel %vm572, %v738, -1e+30
      %v744 = vsel %vm577, %v743, -inf
      %745 = vmax.xlane.f32.xlu0 %v744
      %v746 = vpop.xlane.xlu0 %745
      %v747 = vsub.f32 %v743, %v746
      %v748 = vmul.f32 %v747, 1.442695
      %v749 = vpow.pop %v748
      %v750 = vsel %vm577, %v749, 0.0
      %751 = vadd.xlane.f32.xlu0 %v750
      %v752 = vpop.xlane.xlu0 %751
      %v753 = vrcp.pop %v752
      %v754 = vmul.f32 %v749, %v753
      %v755 = vpack.c.bf16 %v754, %v754
      %v757 = vunpack.c.l.b16 %v688
      %v758 = vpack.c.b16 %v757, %v757
      %759 = vrot.lane.b32.xlu0 %v758, 120
      %v760 = vpop.permute.xlu0 %759
      %v762 = vsel %vm577, %v755, 0
      %v765 = vsel %vm640, %v760, 0
      %767 = vmatprep.subr.bf16.mxu0 0
      %768 = vmatpush1.bf16.msra.mxu0 %v765
      %769 = vmatprep.subr.bf16.mxu0 0
      %770 = vmatpush1.bf16.msra.mxu0 0
      %771 = vmatprep.subr.bf16.mxu0 0
      %772 = vmatpush1.bf16.msra.mxu0 0
      %773 = vmatprep.subr.bf16.mxu0 0
      %774 = vmatpush1.bf16.msra.mxu0 0
      %775 = vmatprep.subr.bf16.mxu0 0
      %776 = vmatpush1.bf16.msra.mxu0 0
      %777 = vmatprep.subr.bf16.mxu0 0
      %778 = vmatpush1.bf16.msra.mxu0 0
      %779 = vmatprep.subr.bf16.mxu0 0
      %780 = vmatpush1.bf16.msra.mxu0 0
      %781 = vmatprep.subr.bf16.mxu0 0
      %782 = vmatpush1.bf16.msra.mxu0 0
      %783 = vmatprep.subr.bf16.mxu0 0
      %784 = vmatpush1.bf16.msra.mxu0 0
      %785 = vmatprep.subr.bf16.mxu0 0
      %786 = vmatpush1.bf16.msra.mxu0 0
      %787 = vmatprep.subr.bf16.mxu0 0
      %788 = vmatpush1.bf16.msra.mxu0 0
      %789 = vmatprep.subr.bf16.mxu0 0
      %790 = vmatpush1.bf16.msra.mxu0 0
      %791 = vmatprep.subr.bf16.mxu0 0
      %792 = vmatpush1.bf16.msra.mxu0 0
      %793 = vmatprep.subr.bf16.mxu0 0
      %794 = vmatpush1.bf16.msra.mxu0 0
      %795 = vmatprep.subr.bf16.mxu0 0
      %796 = vmatpush1.bf16.msra.mxu0 0
      %797 = vmatprep.subr.bf16.mxu0 0
      %798 = vmatpush1.bf16.msra.mxu0 0
      %799 = vmatprep.mubr.bf16.mxu0 0
      %800 = vmatmul.mubr.bf16.gmra.mrb[0].mxu0 %v762
      %v801 = vpop.f32.mrb[0].mxu0
      %v802 = vadd.f32 0.0, %v801
      %v803 = vpop.f32.mrb[0].mxu0
      %v804 = vpop.f32.mrb[0].mxu0
      %v805 = vpop.f32.mrb[0].mxu0
      %806 = vdwg.mxu0
      %v807 = vpack.c.bf16 %v802, %v802
      %v809 = vunpack.c.l.b16 %v807
      %v810 = vpack.c.b16 %v809, %v809
      %811 = vrot.lane.b32.xlu0 %v810, 8
      %v812 = vpop.permute.xlu0 %811
      %vm814 = vcmask 126016
      %815 = vst.msk [vmem:[#allocation4] sm:$0xf] %vm814, %v812
      %v816 = vld [vmem:[#allocation2] sm:$0xf]
      %v817 = vld [vmem:[#allocation3] sm:$0xf]
      %818 = vrot.lane.b32.xlu0 %v574, 112
      %v819 = vpop.permute.xlu0 %818
      %v821 = vunpack.c.l.b16 %v816
      %v822 = vpack.c.b16 %v821, %v821
      %823 = vrot.lane.b32.xlu0 %v822, 112
      %v824 = vpop.permute.xlu0 %823
      %v826 = vsel %vm577, %v819, 0
      %v829 = vsel %vm577, %v824, 0
      %831 = vmatprep.subr.bf16.mxu0 0
      %832 = vmatpush1.bf16.xpose.msra.mxu0 %v829
      %833 = vmatprep.subr.bf16.mxu0 0
      %834 = vmatpush1.bf16.xpose.msra.mxu0 0
      %835 = vmatprep.subr.bf16.mxu0 0
      %836 = vmatpush1.bf16.xpose.msra.mxu0 0
      %837 = vmatprep.subr.bf16.mxu0 0
      %838 = vmatpush1.bf16.xpose.msra.mxu0 0
      %839 = vmatprep.subr.bf16.mxu0 0
      %840 = vmatpush1.bf16.xpose.msra.mxu0 0
      %841 = vmatprep.subr.bf16.mxu0 0
      %842 = vmatpush1.bf16.xpose.msra.mxu0 0
      %843 = vmatprep.subr.bf16.mxu0 0
      %844 = vmatpush1.bf16.xpose.msra.mxu0 0
      %845 = vmatprep.subr.bf16.mxu0 0
      %846 = vmatpush1.bf16.xpose.msra.mxu0 0
      %847 = vmatprep.subr.bf16.mxu0 0
      %848 = vmatpush1.bf16.xpose.msra.mxu0 0
      %849 = vmatprep.subr.bf16.mxu0 0
      %850 = vmatpush1.bf16.xpose.msra.mxu0 0
      %851 = vmatprep.subr.bf16.mxu0 0
      %852 = vmatpush1.bf16.xpose.msra.mxu0 0
      %853 = vmatprep.subr.bf16.mxu0 0
      %854 = vmatpush1.bf16.xpose.msra.mxu0 0
      %855 = vmatprep.subr.bf16.mxu0 0
      %856 = vmatpush1.bf16.xpose.msra.mxu0 0
      %857 = vmatprep.subr.bf16.mxu0 0
      %858 = vmatpush1.bf16.xpose.msra.mxu0 0
      %859 = vmatprep.subr.bf16.mxu0 0
      %860 = vmatpush1.bf16.xpose.msra.mxu0 0
      %861 = vmatprep.subr.bf16.mxu0 0
      %862 = vmatpush1.bf16.xpose.msra.mxu0 0
      %863 = vmatprep.mubr.bf16.mxu0 0
      %864 = vmatmul.mubr.bf16.gmra.mrb[0].mxu0 %v826
      %v865 = vpop.f32.mrb[0].mxu0
      %v866 = vadd.f32 0.0, %v865
      %v867 = vpop.f32.mrb[0].mxu0
      %v868 = vpop.f32.mrb[0].mxu0
      %v869 = vpop.f32.mrb[0].mxu0
      %870 = vdwg.mxu0
      %v871 = vsel %vm572, %v866, -1e+30
      %v872 = vsel %vm577, %v871, -inf
      %873 = vmax.xlane.f32.xlu0 %v872
      %v874 = vpop.xlane.xlu0 %873
      %v875 = vsub.f32 %v871, %v874
      %v876 = vmul.f32 %v875, 1.442695
      %v877 = vpow.pop %v876
      %v878 = vsel %vm577, %v877, 0.0
      %879 = vadd.xlane.f32.xlu0 %v878
      %v880 = vpop.xlane.xlu0 %879
      %v881 = vrcp.pop %v880
      %v882 = vmul.f32 %v877, %v881
      %v883 = vpack.c.bf16 %v882, %v882
      %v885 = vunpack.c.l.b16 %v817
      %v886 = vpack.c.b16 %v885, %v885
      %887 = vrot.lane.b32.xlu0 %v886, 112
      %v888 = vpop.permute.xlu0 %887
      %v890 = vsel %vm577, %v883, 0
      %v893 = vsel %vm640, %v888, 0
      %895 = vmatprep.subr.bf16.mxu0 0
      %896 = vmatpush1.bf16.msra.mxu0 %v893
      %897 = vmatprep.subr.bf16.mxu0 0
      %898 = vmatpush1.bf16.msra.mxu0 0
      %899 = vmatprep.subr.bf16.mxu0 0
      %900 = vmatpush1.bf16.msra.mxu0 0
      %901 = vmatprep.subr.bf16.mxu0 0
      %902 = vmatpush1.bf16.msra.mxu0 0
      %903 = vmatprep.subr.bf16.mxu0 0
      %904 = vmatpush1.bf16.msra.mxu0 0
      %905 = vmatprep.subr.bf16.mxu0 0
      %906 = vmatpush1.bf16.msra.mxu0 0
      %907 = vmatprep.subr.bf16.mxu0 0
      %908 = vmatpush1.bf16.msra.mxu0 0
      %909 = vmatprep.subr.bf16.mxu0 0
      %910 = vmatpush1.bf16.msra.mxu0 0
      %911 = vmatprep.subr.bf16.mxu0 0
      %912 = vmatpush1.bf16.msra.mxu0 0
      %913 = vmatprep.subr.bf16.mxu0 0
      %914 = vmatpush1.bf16.msra.mxu0 0
      %915 = vmatprep.subr.bf16.mxu0 0
      %916 = vmatpush1.bf16.msra.mxu0 0
      %917 = vmatprep.subr.bf16.mxu0 0
      %918 = vmatpush1.bf16.msra.mxu0 0
      %919 = vmatprep.subr.bf16.mxu0 0
      %920 = vmatpush1.bf16.msra.mxu0 0
      %921 = vmatprep.subr.bf16.mxu0 0
      %922 = vmatpush1.bf16.msra.mxu0 0
      %923 = vmatprep.subr.bf16.mxu0 0
      %924 = vmatpush1.bf16.msra.mxu0 0
      %925 = vmatprep.subr.bf16.mxu0 0
      %926 = vmatpush1.bf16.msra.mxu0 0
      %927 = vmatprep.mubr.bf16.mxu0 0
      %928 = vmatmul.mubr.bf16.gmra.mrb[0].mxu0 %v890
      %v929 = vpop.f32.mrb[0].mxu0
      %v930 = vadd.f32 0.0, %v929
      %v931 = vpop.f32.mrb[0].mxu0
      %v932 = vpop.f32.mrb[0].mxu0
      %v933 = vpop.f32.mrb[0].mxu0
      %934 = vdwg.mxu0
      %v935 = vpack.c.bf16 %v930, %v930
      %v937 = vunpack.c.l.b16 %v935
      %v938 = vpack.c.b16 %v937, %v937
      %939 = vrot.lane.b32.xlu0 %v938, 16
      %v940 = vpop.permute.xlu0 %939
      %vm942 = vcmask 191616
      %943 = vst.msk [vmem:[#allocation4] sm:$0xf] %vm942, %v940
      %v944 = vld [vmem:[#allocation2] sm:$0xf]
      %v945 = vld [vmem:[#allocation3] sm:$0xf]
      %946 = vrot.lane.b32.xlu0 %v574, 104
      %v947 = vpop.permute.xlu0 %946
      %v949 = vunpack.c.l.b16 %v944
      %v950 = vpack.c.b16 %v949, %v949
      %951 = vrot.lane.b32.xlu0 %v950, 104
      %v952 = vpop.permute.xlu0 %951
      %v954 = vsel %vm577, %v947, 0
      %v957 = vsel %vm577, %v952, 0
      %959 = vmatprep.subr.bf16.mxu0 0
      %960 = vmatpush1.bf16.xpose.msra.mxu0 %v957
      %961 = vmatprep.subr.bf16.mxu0 0
      %962 = vmatpush1.bf16.xpose.msra.mxu0 0
      %963 = vmatprep.subr.bf16.mxu0 0
      %964 = vmatpush1.bf16.xpose.msra.mxu0 0
      %965 = vmatprep.subr.bf16.mxu0 0
      %966 = vmatpush1.bf16.xpose.msra.mxu0 0
      %967 = vmatprep.subr.bf16.mxu0 0
      %968 = vmatpush1.bf16.xpose.msra.mxu0 0
      %969 = vmatprep.subr.bf16.mxu0 0
      %970 = vmatpush1.bf16.xpose.msra.mxu0 0
      %971 = vmatprep.subr.bf16.mxu0 0
      %972 = vmatpush1.bf16.xpose.msra.mxu0 0
      %973 = vmatprep.subr.bf16.mxu0 0
      %974 = vmatpush1.bf16.xpose.msra.mxu0 0
      %975 = vmatprep.subr.bf16.mxu0 0
      %976 = vmatpush1.bf16.xpose.msra.mxu0 0
      %977 = vmatprep.subr.bf16.mxu0 0
      %978 = vmatpush1.bf16.xpose.msra.mxu0 0
      %979 = vmatprep.subr.bf16.mxu0 0
      %980 = vmatpush1.bf16.xpose.msra.mxu0 0
      %981 = vmatprep.subr.bf16.mxu0 0
      %982 = vmatpush1.bf16.xpose.msra.mxu0 0
      %983 = vmatprep.subr.bf16.mxu0 0
      %984 = vmatpush1.bf16.xpose.msra.mxu0 0
      %985 = vmatprep.subr.bf16.mxu0 0
      %986 = vmatpush1.bf16.xpose.msra.mxu0 0
      %987 = vmatprep.subr.bf16.mxu0 0
      %988 = vmatpush1.bf16.xpose.msra.mxu0 0
      %989 = vmatprep.subr.bf16.mxu0 0
      %990 = vmatpush1.bf16.xpose.msra.mxu0 0
      %991 = vmatprep.mubr.bf16.mxu0 0
      %992 = vmatmul.mubr.bf16.gmra.mrb[0].mxu0 %v954
      %v993 = vpop.f32.mrb[0].mxu0
      %v994 = vadd.f32 0.0, %v993
      %v995 = vpop.f32.mrb[0].mxu0
      %v996 = vpop.f32.mrb[0].mxu0
      %v997 = vpop.f32.mrb[0].mxu0
      %998 = vdwg.mxu0
      %v999 = vsel %vm572, %v994, -1e+30
      %v1000 = vsel %vm577, %v999, -inf
      %1001 = vmax.xlane.f32.xlu0 %v1000
      %v1002 = vpop.xlane.xlu0 %1001
      %v1003 = vsub.f32 %v999, %v1002
      %v1004 = vmul.f32 %v1003, 1.442695
      %v1005 = vpow.pop %v1004
      %v1006 = vsel %vm577, %v1005, 0.0
      %1007 = vadd.xlane.f32.xlu0 %v1006
      %v1008 = vpop.xlane.xlu0 %1007
      %v1009 = vrcp.pop %v1008
      %v1010 = vmul.f32 %v1005, %v1009
      %v1011 = vpack.c.bf16 %v1010, %v1010
      %v1013 = vunpack.c.l.b16 %v945
      %v1014 = vpack.c.b16 %v1013, %v1013
      %1015 = vrot.lane.b32.xlu0 %v1014, 104
      %v1016 = vpop.permute.xlu0 %1015
      %v1018 = vsel %vm577, %v1011, 0
      %v1021 = vsel %vm640, %v1016, 0
      %1023 = vmatprep.subr.bf16.mxu0 0
      %1024 = vmatpush1.bf16.msra.mxu0 %v1021
      %1025 = vmatprep.subr.bf16.mxu0 0
      %1026 = vmatpush1.bf16.msra.mxu0 0
      %1027 = vmatprep.subr.bf16.mxu0 0
      %1028 = vmatpush1.bf16.msra.mxu0 0
      %1029 = vmatprep.subr.bf16.mxu0 0
      %1030 = vmatpush1.bf16.msra.mxu0 0
      %1031 = vmatprep.subr.bf16.mxu0 0
      %1032 = vmatpush1.bf16.msra.mxu0 0
      %1033 = vmatprep.subr.bf16.mxu0 0
      %1034 = vmatpush1.bf16.msra.mxu0 0
      %1035 = vmatprep.subr.bf16.mxu0 0
      %1036 = vmatpush1.bf16.msra.mxu0 0
      %1037 = vmatprep.subr.bf16.mxu0 0
      %1038 = vmatpush1.bf16.msra.mxu0 0
      %1039 = vmatprep.subr.bf16.mxu0 0
      %1040 = vmatpush1.bf16.msra.mxu0 0
      %1041 = vmatprep.subr.bf16.mxu0 0
      %1042 = vmatpush1.bf16.msra.mxu0 0
      %1043 = vmatprep.subr.bf16.mxu0 0
      %1044 = vmatpush1.bf16.msra.mxu0 0
      %1045 = vmatprep.subr.bf16.mxu0 0
      %1046 = vmatpush1.bf16.msra.mxu0 0
      %1047 = vmatprep.subr.bf16.mxu0 0
      %1048 = vmatpush1.bf16.msra.mxu0 0
      %1049 = vmatprep.subr.bf16.mxu0 0
      %1050 = vmatpush1.bf16.msra.mxu0 0
      %1051 = vmatprep.subr.bf16.mxu0 0
      %1052 = vmatpush1.bf16.msra.mxu0 0
      %1053 = vmatprep.subr.bf16.mxu0 0
      %1054 = vmatpush1.bf16.msra.mxu0 0
      %1055 = vmatprep.mubr.bf16.mxu0 0
      %1056 = vmatmul.mubr.bf16.gmra.mrb[0].mxu0 %v1018
      %v1057 = vpop.f32.mrb[0].mxu0
      %v1058 = vadd.f32 0.0, %v1057
      %v1059 = vpop.f32.mrb[0].mxu0
      %v1060 = vpop.f32.mrb[0].mxu0
      %v1061 = vpop.f32.mrb[0].mxu0
      %1062 = vdwg.mxu0
      %v1063 = vpack.c.bf16 %v1058, %v1058
      %v1065 = vunpack.c.l.b16 %v1063
      %v1066 = vpack.c.b16 %v1065, %v1065
      %1067 = vrot.lane.b32.xlu0 %v1066, 24
      %v1068 = vpop.permute.xlu0 %1067
      %vm1070 = vcmask 257216
      %1071 = vst.msk [vmem:[#allocation4] sm:$0xf] %vm1070, %v1068
      %v1072 = vld [vmem:[#allocation4] sm:$0xf]
      %v1073 = vld [vmem:[%s5] sm:$0xf]
      %v1074 = vld [vmem:[%s5 + $0x4] sm:$0xf]
      %v1075 = vld [vmem:[%s5 + $0x8] sm:$0xf]
      %v1076 = vld [vmem:[%s5 + $0xc] sm:$0xf]
      %v1077 = vld [vmem:[%s6] sm:$0x1]
      %v1079 = vlaneseq
      %v1080 = vshrl.u32 %v1079, 7
      %v1081 = vsub.s32 0, %v1080
      %v1082 = vrot.slane %v1077, %v1081
      %v1088 = vunpack.c.l.b16 %v1073
      %v1089 = vunpack.c.l.b16 %v1074
      %v1090 = vunpack.c.l.b16 %v1075
      %v1091 = vunpack.c.l.b16 %v1076
      %v1092 = vpack.c.b16 %v1089, %v1088
      %v1093 = vpack.c.b16 %v1091, %v1090
      %v1097 = vsel %vm461, %v1072, 0
      %1099 = vmatprep.subr.bf16.mxu0 0
      %1100 = vmatpush1.bf16.msra.mxu0 %v1092
      %1101 = vmatprep.subr.bf16.mxu0 0
      %1102 = vmatpush1.bf16.msra.mxu0 %v1093
      %1103 = vmatprep.subr.bf16.mxu0 0
      %1104 = vmatpush1.bf16.msra.mxu0 0
      %1105 = vmatprep.subr.bf16.mxu0 0
      %1106 = vmatpush1.bf16.msra.mxu0 0
      %1107 = vmatprep.subr.bf16.mxu0 0
      %1108 = vmatpush1.bf16.msra.mxu0 0
      %1109 = vmatprep.subr.bf16.mxu0 0
      %1110 = vmatpush1.bf16.msra.mxu0 0
      %1111 = vmatprep.subr.bf16.mxu0 0
      %1112 = vmatpush1.bf16.msra.mxu0 0
      %1113 = vmatprep.subr.bf16.mxu0 0
      %1114 = vmatpush1.bf16.msra.mxu0 0
      %1115 = vmatprep.subr.bf16.mxu0 0
      %1116 = vmatpush1.bf16.msra.mxu0 0
      %1117 = vmatprep.subr.bf16.mxu0 0
      %1118 = vmatpush1.bf16.msra.mxu0 0
      %1119 = vmatprep.subr.bf16.mxu0 0
      %1120 = vmatpush1.bf16.msra.mxu0 0
      %1121 = vmatprep.subr.bf16.mxu0 0
      %1122 = vmatpush1.bf16.msra.mxu0 0
      %1123 = vmatprep.subr.bf16.mxu0 0
      %1124 = vmatpush1.bf16.msra.mxu0 0
      %1125 = vmatprep.subr.bf16.mxu0 0
      %1126 = vmatpush1.bf16.msra.mxu0 0
      %1127 = vmatprep.subr.bf16.mxu0 0
      %1128 = vmatpush1.bf16.msra.mxu0 0
      %1129 = vmatprep.subr.bf16.mxu0 0
      %1130 = vmatpush1.bf16.msra.mxu0 0
      %1131 = vmatprep.mubr.bf16.mxu0 0
      %1132 = vmatmul.mubr.bf16.gmra.mrb[0].mxu0 %v1097
      %v1133 = vpop.f32.mrb[0].mxu0
      %v1134 = vadd.f32 %v1082, %v1133
      %v1135 = vpop.f32.mrb[0].mxu0
      %v1136 = vpop.f32.mrb[0].mxu0
      %v1137 = vpop.f32.mrb[0].mxu0
      %1138 = vdwg.mxu0
      %v1139 = vadd.f32 %v458, %v1134
      %v1140 = vld [vmem:[%s7] sm:$0x1]
      %v1141 = vld [vmem:[%s8] sm:$0x1]
      %v1142 = vsel %vm461, %v1139, 0.0
      %1143 = vadd.xlane.f32.xlu0 %v1142
      %v1144 = vpop.xlane.xlu0 %1143
      %v1145 = vmul.f32 %v1144, %v465
      %v1146 = vsub.f32 %v1139, %v1145
      %v1147 = vmul.f32 %v1146, %v1146
      %v1148 = vsel %vm461, %v1147, 0.0
      %1149 = vadd.xlane.f32.xlu0 %v1148
      %v1150 = vpop.xlane.xlu0 %1149
      %v1151 = vmul.f32 %v1150, %v465
      %v1152 = vadd.f32 %v1151, 1e-05
      %v1153 = vrsqrt.pop %v1152
      %v1154 = vmul.f32 %v1146, %v1153
      %v1156 = vlaneseq
      %v1157 = vshrl.u32 %v1156, 7
      %v1158 = vsub.s32 0, %v1157
      %v1159 = vrot.slane %v1140, %v1158
      %v1161 = vmul.f32 %v1154, %v1159
      %v1163 = vlaneseq
      %v1164 = vshrl.u32 %v1163, 7
      %v1165 = vsub.s32 0, %v1164
      %v1166 = vrot.slane %v1141, %v1165
      %v1168 = vadd.f32 %v1161, %v1166
      %v1169 = vpack.c.bf16 %v1168, %v1168
      %v1170 = vld [vmem:[%s9] sm:$0xf]
      %v1171 = vld [vmem:[%s9 + $0x4] sm:$0xf]
      %v1172 = vld [vmem:[%s9 + $0x8] sm:$0xf]
      %v1173 = vld [vmem:[%s9 + $0xc] sm:$0xf]
      %v1174 = vld [vmem:[%s10] sm:$0x1]
      %v1176 = vlaneseq
      %v1177 = vshrl.u32 %v1176, 7
      %v1178 = vsub.s32 0, %v1177
      %v1179 = vrot.slane %v1174, %v1178
      %v1185 = vunpack.c.l.b16 %v1170
      %v1186 = vunpack.c.l.b16 %v1171
      %v1187 = vunpack.c.l.b16 %v1172
      %v1188 = vunpack.c.l.b16 %v1173
      %v1189 = vpack.c.b16 %v1186, %v1185
      %v1190 = vpack.c.b16 %v1188, %v1187
      %v1194 = vsel %vm461, %v1169, 0
      %1196 = vmatprep.subr.bf16.mxu0 0
      %1197 = vmatpush1.bf16.msra.mxu0 %v1189
      %1198 = vmatprep.subr.bf16.mxu0 0
      %1199 = vmatpush1.bf16.msra.mxu0 %v1190
      %1200 = vmatprep.subr.bf16.mxu0 0
      %1201 = vmatpush1.bf16.msra.mxu0 0
      %1202 = vmatprep.subr.bf16.mxu0 0
      %1203 = vmatpush1.bf16.msra.mxu0 0
      %1204 = vmatprep.subr.bf16.mxu0 0
      %1205 = vmatpush1.bf16.msra.mxu0 0
      %1206 = vmatprep.subr.bf16.mxu0 0
      %1207 = vmatpush1.bf16.msra.mxu0 0
      %1208 = vmatprep.subr.bf16.mxu0 0
      %1209 = vmatpush1.bf16.msra.mxu0 0
      %1210 = vmatprep.subr.bf16.mxu0 0
      %1211 = vmatpush1.bf16.msra.mxu0 0
      %1212 = vmatprep.subr.bf16.mxu0 0
      %1213 = vmatpush1.bf16.msra.mxu0 0
      %1214 = vmatprep.subr.bf16.mxu0 0
      %1215 = vmatpush1.bf16.msra.mxu0 0
      %1216 = vmatprep.subr.bf16.mxu0 0
      %1217 = vmatpush1.bf16.msra.mxu0 0
      %1218 = vmatprep.subr.bf16.mxu0 0
      %1219 = vmatpush1.bf16.msra.mxu0 0
      %1220 = vmatprep.subr.bf16.mxu0 0
      %1221 = vmatpush1.bf16.msra.mxu0 0
      %1222 = vmatprep.subr.bf16.mxu0 0
      %1223 = vmatpush1.bf16.msra.mxu0 0
      %1224 = vmatprep.subr.bf16.mxu0 0
      %1225 = vmatpush1.bf16.msra.mxu0 0
      %1226 = vmatprep.subr.bf16.mxu0 0
      %1227 = vmatpush1.bf16.msra.mxu0 0
      %1228 = vmatprep.mubr.bf16.mxu0 0
      %1229 = vmatmul.mubr.bf16.gmra.mrb[0].mxu0 %v1194
      %v1230 = vpop.f32.mrb[0].mxu0
      %v1231 = vadd.f32 %v1179, %v1230
      %v1232 = vpop.f32.mrb[0].mxu0
      %v1233 = vpop.f32.mrb[0].mxu0
      %v1234 = vpop.f32.mrb[0].mxu0
      %1235 = vdwg.mxu0
      %v1236 = vmul.f32 %v1231, 1.702
      %v1237 = vxor.u32 %v1236, 2147483648
      %v1238 = vmul.f32 %v1237, 1.442695
      %v1239 = vpow.pop %v1238
      %v1240 = vadd.f32 %v1239, 1.0
      %v1241 = vrcp.pop %v1240
      %v1242 = vmul.f32 1.0, %v1241
      %v1243 = vmul.f32 %v1231, %v1242
      %v1244 = vpack.c.bf16 %v1243, %v1243
      %v1245 = vld [vmem:[%s11] sm:$0xf]
      %v1246 = vld [vmem:[%s11 + $0x4] sm:$0xf]
      %v1247 = vld [vmem:[%s11 + $0x8] sm:$0xf]
      %v1248 = vld [vmem:[%s11 + $0xc] sm:$0xf]
      %v1249 = vld [vmem:[%s11 + $0x10] sm:$0xf]
      %v1250 = vld [vmem:[%s11 + $0x14] sm:$0xf]
      %v1251 = vld [vmem:[%s11 + $0x18] sm:$0xf]
      %v1252 = vld [vmem:[%s11 + $0x1c] sm:$0xf]
      %v1253 = vld [vmem:[%s11 + $0x20] sm:$0xf]
      %v1254 = vld [vmem:[%s11 + $0x24] sm:$0xf]
      %v1255 = vld [vmem:[%s11 + $0x28] sm:$0xf]
      %v1256 = vld [vmem:[%s11 + $0x2c] sm:$0xf]
      %v1257 = vld [vmem:[%s11 + $0x30] sm:$0xf]
      %v1258 = vld [vmem:[%s11 + $0x34] sm:$0xf]
      %v1259 = vld [vmem:[%s11 + $0x38] sm:$0xf]
      %v1260 = vld [vmem:[%s11 + $0x3c] sm:$0xf]
      %v1261 = vld [vmem:[%s12] sm:$0x1]
      %v1263 = vlaneseq
      %v1264 = vshrl.u32 %v1263, 7
      %v1265 = vsub.s32 0, %v1264
      %v1266 = vrot.slane %v1261, %v1265
      %v1284 = vunpack.c.l.b16 %v1245
      %v1285 = vunpack.c.l.b16 %v1246
      %v1286 = vunpack.c.l.b16 %v1247
      %v1287 = vunpack.c.l.b16 %v1248
      %v1288 = vunpack.c.l.b16 %v1249
      %v1289 = vunpack.c.l.b16 %v1250
      %v1290 = vunpack.c.l.b16 %v1251
      %v1291 = vunpack.c.l.b16 %v1252
      %v1292 = vunpack.c.l.b16 %v1253
      %v1293 = vunpack.c.l.b16 %v1254
      %v1294 = vunpack.c.l.b16 %v1255
      %v1295 = vunpack.c.l.b16 %v1256
      %v1296 = vunpack.c.l.b16 %v1257
      %v1297 = vunpack.c.l.b16 %v1258
      %v1298 = vunpack.c.l.b16 %v1259
      %v1299 = vunpack.c.l.b16 %v1260
      %v1300 = vpack.c.b16 %v1285, %v1284
      %v1301 = vpack.c.b16 %v1287, %v1286
      %v1302 = vpack.c.b16 %v1289, %v1288
      %v1303 = vpack.c.b16 %v1291, %v1290
      %v1304 = vpack.c.b16 %v1293, %v1292
      %v1305 = vpack.c.b16 %v1295, %v1294
      %v1306 = vpack.c.b16 %v1297, %v1296
      %v1307 = vpack.c.b16 %v1299, %v1298
      %1316 = vmatprep.subr.bf16.mxu0 0
      %1317 = vmatpush1.bf16.msra.mxu0 %v1300
      %1318 = vmatprep.subr.bf16.mxu0 0
      %1319 = vmatpush1.bf16.msra.mxu0 %v1301
      %1320 = vmatprep.subr.bf16.mxu0 0
      %1321 = vmatpush1.bf16.msra.mxu0 %v1302
      %1322 = vmatprep.subr.bf16.mxu0 0
      %1323 = vmatpush1.bf16.msra.mxu0 %v1303
      %1324 = vmatprep.subr.bf16.mxu0 0
      %1325 = vmatpush1.bf16.msra.mxu0 %v1304
      %1326 = vmatprep.subr.bf16.mxu0 0
      %1327 = vmatpush1.bf16.msra.mxu0 %v1305
      %1328 = vmatprep.subr.bf16.mxu0 0
      %1329 = vmatpush1.bf16.msra.mxu0 %v1306
      %1330 = vmatprep.subr.bf16.mxu0 0
      %1331 = vmatpush1.bf16.msra.mxu0 %v1307
      %1332 = vmatprep.subr.bf16.mxu0 0
      %1333 = vmatpush1.bf16.msra.mxu0 0
      %1334 = vmatprep.subr.bf16.mxu0 0
      %1335 = vmatpush1.bf16.msra.mxu0 0
      %1336 = vmatprep.subr.bf16.mxu0 0
      %1337 = vmatpush1.bf16.msra.mxu0 0
      %1338 = vmatprep.subr.bf16.mxu0 0
      %1339 = vmatpush1.bf16.msra.mxu0 0
      %1340 = vmatprep.subr.bf16.mxu0 0
      %1341 = vmatpush1.bf16.msra.mxu0 0
      %1342 = vmatprep.subr.bf16.mxu0 0
      %1343 = vmatpush1.bf16.msra.mxu0 0
      %1344 = vmatprep.subr.bf16.mxu0 0
      %1345 = vmatpush1.bf16.msra.mxu0 0
      %1346 = vmatprep.subr.bf16.mxu0 0
      %1347 = vmatpush1.bf16.msra.mxu0 0
      %1348 = vmatprep.mubr.bf16.mxu0 0
      %1349 = vmatmul.mubr.bf16.gmra.mrb[0].mxu0 %v1244
      %v1350 = vpop.f32.mrb[0].mxu0
      %v1351 = vadd.f32 %v1266, %v1350
      %v1352 = vpop.f32.mrb[0].mxu0
      %v1353 = vpop.f32.mrb[0].mxu0
      %v1354 = vpop.f32.mrb[0].mxu0
      %1355 = vdwg.mxu0
      %v1356 = vadd.f32 %v1139, %v1351
      %v1357 = vpack.c.bf16 %v1356, %v1356
      %1358 = vst.msk [vmem:[%s455] sm:$0xf] %vm564, %v1357
      %p1359 = scmp.lt.s32.totalorder %s28, 1
      %s1360 = scalar_select %p1359, %s28, 1
      %p1361 = scmp.lt.s32.totalorder %s29, 0
      %s1362 = scalar_select %p1361, %s29, 0
      %s1363 = sadd.s32 %s1362, %s1360
      %s1364 = smul.addr %s1363, 4
      %s1365 = scalar_lea.vmem %s13, %s1364
      // Predicated region
      $region73: #{vision_transformer_forward.5} parent=71 // pred_check
        %p1366 = pneg %p334
      $region74: #{vision_transformer_forward.5} parent=71 // pred_check_branch
        %1368 = sbr.rel (%p1366) target = $region76
      $region75: #{vision_transformer_forward.5} parent=71 // pred_region
        _
      $region76: #{vision_transformer_forward.5} parent=71 // pred_fallthru
        _
    $region72: #{vision_transformer_forward.5} parent=5 // pred_fallthru
      _
    %p1369 = scmp.le.s32.totalorder 2, %s19
    // Predicated region
    $region77: #{vision_transformer_forward.5} parent=5 // pred_check
      %p1370 = pneg %p1369
    $region78: #{vision_transformer_forward.5} parent=5 // pred_check_branch
      %1372 = sbr.rel (%p1370) target = $region80
    $region79: #{vision_transformer_forward.5} parent=5 // pred_region
      %s1373 = ssub.s32 %s19, 2
      // Predicated region
      $region81: #{vision_transformer_forward.5} parent=79 // pred_check
        %p1374 = pneg %p340
      $region82: #{vision_transformer_forward.5} parent=79 // pred_check_branch
        %1376 = sbr.rel (%p1374) target = $region84
      $region83: #{vision_transformer_forward.5} parent=79 // pred_region
        %p1377 = scmp.lt.s32.totalorder %s30, 1
        %s1378 = scalar_select %p1377, %s30, 1
        %p1379 = scmp.lt.s32.totalorder %s31, 0
        %s1380 = scalar_select %p1379, %s31, 0
        %s1381 = sadd.s32 %s1380, %s1378
        %s1382 = smul.addr %s1381, 4
        %s1383 = scalar_lea.vmem %s13, %s1382
      $region84: #{vision_transformer_forward.5} parent=79 // pred_fallthru
        _
    $region80: #{vision_transformer_forward.5} parent=5 // pred_fallthru
      _
  $region6: #{vision_transformer_forward.5} parent=0 // loop_footer
    %s23 = sadd.s32 1, %s19
  $region7: #{vision_transformer_forward.5} parent=0 // loop_footer_branch
    %18 = sbr.rel target = $region3
  $region8: #{vision_transformer_forward.5} parent=0 // loop_exit
    _

</llo_original>
